<compile_context>
chip_gen: v5e
topology: v5e:2x2
jax: 0.10.0
libtpu: 0.0.40
codegen_flags: <defaults>
</compile_context>

<pallas_src>
import functools
import math

import jax
import jax.numpy as jnp
from jax.experimental import pallas as pl
from jax.experimental.pallas import tpu as pltpu


def mha_kernel(x_ref, wqkv_ref, bqkv_ref, wo_ref, bo_ref, gamma_ref, beta_ref,
               out_ref, attn_ref, q_scr, k_scr, v_scr,
               *, num_head, d_k, q_block, eps, approx_recip):
    """Grid = (batch, q_tile). Q/K/V cached in VMEM scratch across the q-tile axis."""
    H, dk, qb = num_head, d_k, q_block
    S = x_ref.shape[1]
    D = x_ref.shape[2]
    mm = wqkv_ref.dtype          # MXU operand dtype (bf16 by default, f32 optional)
    t = pl.program_id(1)

    # ---- Once per batch element (first q-tile): fused QKV projection for all rows,
    #      cached head-split in scratch.  1/sqrt(d_k) is already folded into W_q. ----
    @pl.when(t == 0)
    def _project_qkv():
        x_full = x_ref[0]                                                # (S, D) f32
        qkv = jnp.dot(x_full.astype(mm), wqkv_ref[...],
                      preferred_element_type=jnp.float32) + bqkv_ref[0]  # (S, 3D) f32
        qkv = qkv.astype(mm)                                             # single cast

        def to_heads(a):          # (S, D) -> (H, S, dk): one reshape + one transpose
            return jnp.transpose(a.reshape(S, H, dk), (1, 0, 2))

        q_scr[...] = to_heads(qkv[:, :D])
        k_scr[...] = to_heads(qkv[:, D:2 * D])
        v_scr[...] = to_heads(qkv[:, 2 * D:])

    # ---- Per q-tile attention (all heads batched; contraction on the last axis). ----
    row0 = pl.multiple_of(t * qb, qb)
    q = q_scr[:, pl.ds(row0, qb), :]                                     # (H, qb, dk)
    scores = jnp.einsum("hqd,hkd->hqk", q, k_scr[...],
                        preferred_element_type=jnp.float32)              # (H, qb, S) f32
    # NOTE: attn_mask intentionally NOT applied (faithful to the reference, which
    # passes a mask to Scaled_Dot_Product_Attention but never uses it).

    # Softmax in f32: max-subtract, exp, row-sum; reciprocal on the EUP slot.
    m = jnp.max(scores, axis=-1, keepdims=True)
    e = jnp.exp(scores - m)
    p = e * pl.reciprocal(jnp.sum(e, axis=-1, keepdims=True), approx=approx_recip)

    # Single lane-dense (H, qb, S) store per grid step (last dim = full S).
    attn_ref[0] = p.astype(attn_ref.dtype)

    ctx = jnp.einsum("hqk,hkd->hqd", p.astype(mm), v_scr[...],
                     preferred_element_type=jnp.float32)                 # (H, qb, dk)
    context = jnp.transpose(ctx, (1, 0, 2)).reshape(qb, D)               # merge heads

    # Output projection + residual + LayerNorm (biased variance, eps=1e-5), all f32.
    out = jnp.dot(context.astype(mm), wo_ref[...],
                  preferred_element_type=jnp.float32) + bo_ref[0]        # (qb, D)
    x_t = x_ref[0, pl.ds(row0, qb), :]                                   # (qb, D) f32
    y = out + x_t
    mean = jnp.mean(y, axis=-1, keepdims=True)
    var = jnp.mean((y - mean) ** 2, axis=-1, keepdims=True)
    out_ref[0] = ((y - mean) * jax.lax.rsqrt(var + eps)) * gamma_ref[0] + beta_ref[0]


def _vmem_limit_bytes():
    """Generation-aware VMEM cap (~75% of physical: ~96 MiB on v5e/v6e, ~48 MiB on
    v7x) instead of a hardcoded 32 MiB."""
    try:
        cap = int(pltpu.get_tpu_info().vmem_capacity_bytes)
    except Exception:
        cap = 64 * 1024 * 1024   # conservative fallback if the query is unavailable
    return min((cap * 3) // 4, 100 * 1024 * 1024)


def _pick_q_block(S):
    if S <= 512:
        return S
    for cand in (512, 256, 128):
        if S % cand == 0:
            return cand
    return S   # ragged S: single tile (see TODO above)


def multi_head_attention(x, params, num_head, attn_mask=None, *,
                         matmul_dtype=jnp.bfloat16,
                         attn_dtype=jnp.float32,
                         q_block=None,
                         approx_recip=True):
    """Pallas MHA. attn_mask is accepted for API parity but (as in the reference) unused.

    matmul_dtype: MXU operand dtype. bfloat16 (default) is native on v5e/v6e/v7x,
      halves weight/score-operand traffic and roughly doubles MXU throughput;
      accumulation and all elementwise math (softmax, LayerNorm) stay float32, so it
      is also the right default on v5e (no bf16 VPU/EUP there). Pass jnp.float32 for
      bit-conservative results.
    attn_dtype: dtype of the returned attention probabilities. bfloat16 halves the
      dominant (B,H,S,S) HBM writeback if downstream tolerates it.
    approx_recip: use the EUP approximate reciprocal in the softmax (rows then sum to
      1 only to ~1e-3); pass False if p_attn is consumed by something picky.
    """
    del attn_mask
    x = x.astype(jnp.float32)
    B, S, D = x.shape
    assert D % num_head == 0
    d_k = D // num_head

    if q_block is None:
        q_block = _pick_q_block(S)
    assert S % q_block == 0 and (q_block == S or q_block % 8 == 0)
    n_q_tiles = S // q_block

    # Host-side weight prep: fuse Q/K/V into one (D, 3D) matmul and fold 1/sqrt(d_k)
    # into W_q / b_q (removes the O(H*S^2) in-kernel score scaling).
    inv_sqrt_dk = 1.0 / math.sqrt(d_k)
    w_qkv = jnp.concatenate([params["wq"] * inv_sqrt_dk, params["wk"], params["wv"]],
                            axis=1).astype(matmul_dtype)                 # (D, 3D)
    b_qkv = jnp.concatenate([params["bq"] * inv_sqrt_dk, params["bk"], params["bv"]],
                            axis=1).astype(jnp.float32)                  # (1, 3D)
    w_o = params["wo"].astype(matmul_dtype)                              # (D, D)
    b_o = params["bo"].astype(jnp.float32)
    gamma = params["gamma"].astype(jnp.float32)
    beta = params["beta"].astype(jnp.float32)

    kernel = functools.partial(mha_kernel, num_head=num_head, d_k=d_k,
                               q_block=q_block, eps=1e-5, approx_recip=approx_recip)

    def _build(single_buffer_weights):
        def const_spec(shape):
            # Same full weight/bias block at every grid step; single-buffer it so the
            # pipeline does not allocate a dead second copy (matters on v7x 64 MiB).
            idx = lambda b, t: (0,) * len(shape)
            if single_buffer_weights:
                return pl.BlockSpec(shape, idx, pipeline_mode=pl.Buffered(1))
            return pl.BlockSpec(shape, idx)

        in_specs = [
            # x stays resident per batch element across the q-tile axis.
            pl.BlockSpec((1, S, D), lambda b, t: (b, 0, 0)),
            const_spec((D, 3 * D)), const_spec((1, 3 * D)),   # fused W_qkv, b_qkv
            const_spec((D, D)), const_spec((1, D)),           # W_O, b_O
            const_spec((1, D)), const_spec((1, D)),           # LayerNorm gamma, beta
        ]
        out_specs = (
            pl.BlockSpec((1, q_block, D), lambda b, t: (b, t, 0)),
            # attn block: q-tiled, last dim kept = full S (lane-dense stores).
            pl.BlockSpec((1, num_head, q_block, S), lambda b, t: (b, 0, t, 0)),
        )
        out_shape = (
            jax.ShapeDtypeStruct((B, S, D), jnp.float32),
            jax.ShapeDtypeStruct((B, num_head, S, S), attn_dtype),
        )
        grid_spec = pltpu.PrefetchScalarGridSpec(
            num_scalar_prefetch=0,
            grid=(B, n_q_tiles),
            in_specs=in_specs,
            out_specs=out_specs,
            scratch_shapes=[
                pltpu.VMEM((num_head, S, d_k), matmul_dtype),   # Q (head-split)
                pltpu.VMEM((num_head, S, d_k), matmul_dtype),   # K
                pltpu.VMEM((num_head, S, d_k), matmul_dtype),   # V
            ],
        )
        return pl.pallas_call(
            kernel,
            out_shape=out_shape,
            grid_spec=grid_spec,
            compiler_params=pltpu.CompilerParams(
                # q-tile axis must be "arbitrary": K/V scratch is carried across it.
                # (For v7x B=1 workloads, recomputing K/V per tile would allow a
                # parallel q axis across the 2 TCs -- not done here.)
                dimension_semantics=("parallel", "arbitrary"),
                vmem_limit_bytes=_vmem_limit_bytes(),
            ),
        )

    args = (x, w_qkv, b_qkv, w_o, b_o, gamma, beta)
    try:
        return _build(single_buffer_weights=True)(*args)
    except Exception:
        # pipeline_mode=pl.Buffered(1) not supported on this JAX version: fall back
        # to default double-buffered weight blocks (costs 2x weight VMEM, same math).
        return _build(single_buffer_weights=False)(*args)


def reference_mha(x, params, num_head):
    """Plain-JAX reference matching the PyTorch forward (correctness check)."""
    with jax.default_matmul_precision("highest"):
        x = x.astype(jnp.float32)
        B, S, D = x.shape
        d_k = D // num_head
        Q = x @ params["wq"] + params["bq"][0]
        K = x @ params["wk"] + params["bk"][0]
        V = x @ params["wv"] + params["bv"][0]
        reshape_heads = lambda t: t.reshape(B, S, num_head, d_k).transpose(0, 2, 1, 3)
        Qh, Kh, Vh = reshape_heads(Q), reshape_heads(K), reshape_heads(V)
        scores = jnp.einsum("bhqd,bhkd->bhqk", Qh, Kh) / math.sqrt(d_k)
        p = jax.nn.softmax(scores, axis=-1)
        ctx = jnp.einsum("bhqk,bhkd->bhqd", p, Vh)
        ctx = ctx.transpose(0, 2, 1, 3).reshape(B, S, D)
        out = ctx @ params["wo"] + params["bo"][0]
        y = out + x
        mean = jnp.mean(y, axis=-1, keepdims=True)
        var = jnp.mean((y - mean) ** 2, axis=-1, keepdims=True)
        normed = (y - mean) / jnp.sqrt(var + 1e-5)
        return normed * params["gamma"][0] + params["beta"][0], p


def init_params(key, d_model):
    ks = jax.random.split(key, 8)
    lim = 1.0 / math.sqrt(d_model)
    u = lambda k, shape: jax.random.uniform(k, shape, jnp.float32, -lim, lim)
    return {
        "wq": u(ks[0], (d_model, d_model)), "bq": u(ks[1], (1, d_model)),
        "wk": u(ks[2], (d_model, d_model)), "bk": u(ks[3], (1, d_model)),
        "wv": u(ks[4], (d_model, d_model)), "bv": u(ks[5], (1, d_model)),
        "wo": u(ks[6], (d_model, d_model)), "bo": u(ks[7], (1, d_model)),
        "gamma": jnp.ones((1, d_model), jnp.float32),
        "beta": jnp.zeros((1, d_model), jnp.float32),
    }


if __name__ == "__main__":
    # Small demo shapes.  NOTE: tuning (q_block, buffering, dtype) must be done at
    # realistic shapes (S >= 512, D >= 1024) -- here every matmul is a fraction of one
    # MXU tile and per-grid-step overhead dominates, so timings do not transfer.
    B, S, d_model, num_head = 2, 8, 32, 4

    key = jax.random.PRNGKey(0)
    k_x, k_p = jax.random.split(key)
    x = jax.random.normal(k_x, (B, S, d_model), jnp.float32)
    params = init_params(k_p, d_model)
    attn_mask = jnp.ones((B, S, S), jnp.float32)   # accepted but (as in reference) unused

    ref_out, ref_attn = reference_mha(x, params, num_head)

    # float32 MXU-operand path.  Tolerance leaves headroom for the EUP approximate
    # reciprocal in the softmax and the TPU MXU pass decomposition of f32 matmuls;
    # structural/indexing bugs would show as O(0.1+) errors.
    out32, attn32 = multi_head_attention(x, params, num_head, attn_mask,
                                         matmul_dtype=jnp.float32)
    out32 = jax.block_until_ready(out32)
    attn32 = jax.block_until_ready(attn32)
    assert out32.shape == (B, S, d_model) and attn32.shape == (B, num_head, S, S)
    assert jnp.allclose(out32, ref_out, atol=2e-2, rtol=2e-2), \
        float(jnp.max(jnp.abs(out32 - ref_out)))
    assert jnp.allclose(attn32, ref_attn, atol=2e-2, rtol=2e-2), \
        float(jnp.max(jnp.abs(attn32 - ref_attn)))

    # Default bfloat16 MXU-operand path (accumulation stays float32): looser tolerance.
    out16, attn16 = multi_head_attention(x, params, num_head, attn_mask)
    out16 = jax.block_until_ready(out16)
    attn16 = jax.block_until_ready(attn16)
    assert out16.shape == (B, S, d_model) and attn16.shape == (B, num_head, S, S)
    assert jnp.allclose(out16, ref_out, atol=5e-2, rtol=5e-2), \
        float(jnp.max(jnp.abs(out16 - ref_out)))
    assert jnp.allclose(attn16, ref_attn, atol=5e-2, rtol=5e-2), \
        float(jnp.max(jnp.abs(attn16 - ref_attn)))

    print("KERNEL_OK")
</pallas_src>

<mosaic_0001>
module attributes {stable_mosaic.version = 11 : i64} {
  func.func @mha_kernel(%arg0: i32, %arg1: i32, %arg2: memref<1x8x32xf32, #tpu.memory_space<vmem>>, %arg3: memref<32x96xf32, #tpu.memory_space<vmem>>, %arg4: memref<1x96xf32, #tpu.memory_space<vmem>>, %arg5: memref<32x32xf32, #tpu.memory_space<vmem>>, %arg6: memref<1x32xf32, #tpu.memory_space<vmem>>, %arg7: memref<1x32xf32, #tpu.memory_space<vmem>>, %arg8: memref<1x32xf32, #tpu.memory_space<vmem>>, %arg9: memref<1x8x32xf32, #tpu.memory_space<vmem>>, %arg10: memref<1x4x8x8xf32, #tpu.memory_space<vmem>>, %arg11: memref<4x8x8xf32, #tpu.memory_space<vmem>>, %arg12: memref<4x8x8xf32, #tpu.memory_space<vmem>>, %arg13: memref<4x8x8xf32, #tpu.memory_space<vmem>>) attributes {dimension_semantics = [#tpu.dimension_semantics<parallel>, #tpu.dimension_semantics<arbitrary>], iteration_bounds = array<i64: 2, 1>, scalar_prefetch = 0 : i64, scratch_operands = 3 : i64, tpu.core_type = #tpu.core_type<tc>, window_params = [{transform_indices = @transform_0, window_bounds = array<i64: 1, 8, 32>}, {pipeline_mode = #tpu.pipeline_mode<synchronous>, transform_indices = @transform_1, window_bounds = array<i64: 32, 96>}, {pipeline_mode = #tpu.pipeline_mode<synchronous>, transform_indices = @transform_2, window_bounds = array<i64: 1, 96>}, {pipeline_mode = #tpu.pipeline_mode<synchronous>, transform_indices = @transform_3, window_bounds = array<i64: 32, 32>}, {pipeline_mode = #tpu.pipeline_mode<synchronous>, transform_indices = @transform_4, window_bounds = array<i64: 1, 32>}, {pipeline_mode = #tpu.pipeline_mode<synchronous>, transform_indices = @transform_5, window_bounds = array<i64: 1, 32>}, {pipeline_mode = #tpu.pipeline_mode<synchronous>, transform_indices = @transform_6, window_bounds = array<i64: 1, 32>}, {transform_indices = @transform_7, window_bounds = array<i64: 1, 8, 32>}, {transform_indices = @transform_8, window_bounds = array<i64: 1, 4, 8, 8>}]} {
    %c0_i32 = arith.constant 0 : i32
    %0 = arith.cmpi eq, %arg1, %c0_i32 : i32
    %1 = arith.extui %0 : i1 to i32
    %c0_i32_0 = arith.constant 0 : i32
    %2 = arith.cmpi ne, %1, %c0_i32_0 : i32
    scf.if %2 {
      %c0_34 = arith.constant 0 : index
      %c0_35 = arith.constant 0 : index
      %c0_36 = arith.constant 0 : index
      %68 = vector.load %arg2[%c0_34, %c0_35, %c0_36] : memref<1x8x32xf32, #tpu.memory_space<vmem>>, vector<1x8x32xf32>
      %69 = vector.shape_cast %68 : vector<1x8x32xf32> to vector<8x32xf32>
      %c0_37 = arith.constant 0 : index
      %c0_38 = arith.constant 0 : index
      %70 = vector.load %arg3[%c0_37, %c0_38] : memref<32x96xf32, #tpu.memory_space<vmem>>, vector<32x96xf32>
      %cst_39 = arith.constant dense<0.000000e+00> : vector<8x96xf32>
      %71 = tpu.matmul %69, %70, %cst_39 {dimension_numbers = #tpu.dot_dimension_numbers<[1], [0], [0], [1], [0, 0, 1, 1], [], []>} : vector<8x32xf32>, vector<32x96xf32>, vector<8x96xf32> -> vector<8x96xf32>
      %c0_40 = arith.constant 0 : index
      %c0_41 = arith.constant 0 : index
      %72 = vector.load %arg4[%c0_40, %c0_41] : memref<1x96xf32, #tpu.memory_space<vmem>>, vector<1x96xf32>
      %73 = vector.shape_cast %72 : vector<1x96xf32> to vector<96xf32>
      %74 = vector.shape_cast %73 : vector<96xf32> to vector<1x96xf32>
      %75 = vector.broadcast %74 : vector<1x96xf32> to vector<8x96xf32>
      %76 = arith.addf %71, %75 : vector<8x96xf32>
      %77 = vector.extract_strided_slice %76 {offsets = [0, 0], sizes = [8, 32], strides = [1, 1]} : vector<8x96xf32> to vector<8x32xf32>
      %78 = vector.shape_cast %77 : vector<8x32xf32> to vector<8x4x8xf32>
      %79 = tpu.transpose %78, [1, 0, 2] : vector<8x4x8xf32> -> vector<4x8x8xf32>
      %c0_42 = arith.constant 0 : index
      %c0_43 = arith.constant 0 : index
      %c0_44 = arith.constant 0 : index
      %80 = vector.load %arg11[%c0_42, %c0_43, %c0_44] : memref<4x8x8xf32, #tpu.memory_space<vmem>>, vector<4x8x8xf32>
      tpu.vector_store %arg11[%c0_42, %c0_43, %c0_44], %79 {strides = array<i32>} : memref<4x8x8xf32, #tpu.memory_space<vmem>>, vector<4x8x8xf32>,
      %81 = vector.extract_strided_slice %76 {offsets = [0, 32], sizes = [8, 32], strides = [1, 1]} : vector<8x96xf32> to vector<8x32xf32>
      %82 = vector.shape_cast %81 : vector<8x32xf32> to vector<8x4x8xf32>
      %83 = tpu.transpose %82, [1, 0, 2] : vector<8x4x8xf32> -> vector<4x8x8xf32>
      %c0_45 = arith.constant 0 : index
      %c0_46 = arith.constant 0 : index
      %c0_47 = arith.constant 0 : index
      %84 = vector.load %arg12[%c0_45, %c0_46, %c0_47] : memref<4x8x8xf32, #tpu.memory_space<vmem>>, vector<4x8x8xf32>
      tpu.vector_store %arg12[%c0_45, %c0_46, %c0_47], %83 {strides = array<i32>} : memref<4x8x8xf32, #tpu.memory_space<vmem>>, vector<4x8x8xf32>,
      %85 = vector.extract_strided_slice %76 {offsets = [0, 64], sizes = [8, 32], strides = [1, 1]} : vector<8x96xf32> to vector<8x32xf32>
      %86 = vector.shape_cast %85 : vector<8x32xf32> to vector<8x4x8xf32>
      %87 = tpu.transpose %86, [1, 0, 2] : vector<8x4x8xf32> -> vector<4x8x8xf32>
      %c0_48 = arith.constant 0 : index
      %c0_49 = arith.constant 0 : index
      %c0_50 = arith.constant 0 : index
      %88 = vector.load %arg13[%c0_48, %c0_49, %c0_50] : memref<4x8x8xf32, #tpu.memory_space<vmem>>, vector<4x8x8xf32>
      tpu.vector_store %arg13[%c0_48, %c0_49, %c0_50], %87 {strides = array<i32>} : memref<4x8x8xf32, #tpu.memory_space<vmem>>, vector<4x8x8xf32>,
    } else {
    }
    %c8_i32 = arith.constant 8 : i32
    %3 = arith.muli %arg1, %c8_i32 : i32
    %4 = tpu.assume_multiple %3, 8 : i32
    %c0 = arith.constant 0 : index
    %5 = arith.index_cast %4 : i32 to index
    %c0_1 = arith.constant 0 : index
    %6 = vector.load %arg11[%c0, %5, %c0_1] : memref<4x8x8xf32, #tpu.memory_space<vmem>>, vector<4x8x8xf32>
    %c0_2 = arith.constant 0 : index
    %c0_3 = arith.constant 0 : index
    %c0_4 = arith.constant 0 : index
    %7 = vector.load %arg12[%c0_2, %c0_3, %c0_4] : memref<4x8x8xf32, #tpu.memory_space<vmem>>, vector<4x8x8xf32>
    "tpu.trace_start"() <{level = 10 : i32, message = "hqd,hkd->hqk"}> : () -> ()
    %cst = arith.constant dense<0.000000e+00> : vector<4x8x8xf32>
    %8 = tpu.matmul %6, %7, %cst {dimension_numbers = #tpu.dot_dimension_numbers<[2], [2], [1], [1], [0, 0, 0, 1, 1, 1], [0], [0]>} : vector<4x8x8xf32>, vector<4x8x8xf32>, vector<4x8x8xf32> -> vector<4x8x8xf32>
    "tpu.trace_stop"() : () -> ()
    %cst_5 = arith.constant dense<0xFF800000> : vector<4x8xf32>
    %9 = vector.multi_reduction <maximumf>, %8, %cst_5 [2] : vector<4x8x8xf32> to vector<4x8xf32>
    %10 = vector.shape_cast %9 : vector<4x8xf32> to vector<4x8x1xf32>
    %11 = vector.broadcast %10 : vector<4x8x1xf32> to vector<4x8x8xf32>
    %12 = arith.subf %8, %11 : vector<4x8x8xf32>
    %13 = math.exp %12 : vector<4x8x8xf32>
    %cst_6 = arith.constant dense<0.000000e+00> : vector<4x8xf32>
    %14 = vector.multi_reduction <add>, %13, %cst_6 [2] : vector<4x8x8xf32> to vector<4x8xf32>
    %15 = vector.shape_cast %14 : vector<4x8xf32> to vector<4x8x1xf32>
    %16 = tpu.reciprocal %15 {approx = true} : vector<4x8x1xf32> -> vector<4x8x1xf32>
    %17 = vector.broadcast %16 : vector<4x8x1xf32> to vector<4x8x8xf32>
    %18 = arith.mulf %13, %17 : vector<4x8x8xf32>
    %c0_7 = arith.constant 0 : index
    %c0_8 = arith.constant 0 : index
    %c0_9 = arith.constant 0 : index
    %c0_10 = arith.constant 0 : index
    %19 = vector.load %arg10[%c0_7, %c0_8, %c0_9, %c0_10] : memref<1x4x8x8xf32, #tpu.memory_space<vmem>>, vector<1x4x8x8xf32>
    %20 = vector.shape_cast %19 : vector<1x4x8x8xf32> to vector<4x8x8xf32>
    %21 = vector.shape_cast %18 : vector<4x8x8xf32> to vector<1x4x8x8xf32>
    tpu.vector_store %arg10[%c0_7, %c0_8, %c0_9, %c0_10], %21 {strides = array<i32>} : memref<1x4x8x8xf32, #tpu.memory_space<vmem>>, vector<1x4x8x8xf32>,
    %c0_11 = arith.constant 0 : index
    %c0_12 = arith.constant 0 : index
    %c0_13 = arith.constant 0 : index
    %22 = vector.load %arg13[%c0_11, %c0_12, %c0_13] : memref<4x8x8xf32, #tpu.memory_space<vmem>>, vector<4x8x8xf32>
    "tpu.trace_start"() <{level = 10 : i32, message = "hqk,hkd->hqd"}> : () -> ()
    %cst_14 = arith.constant dense<0.000000e+00> : vector<4x8x8xf32>
    %23 = tpu.matmul %18, %22, %cst_14 {dimension_numbers = #tpu.dot_dimension_numbers<[2], [1], [1], [2], [0, 0, 0, 1, 1, 2], [0], [0]>} : vector<4x8x8xf32>, vector<4x8x8xf32>, vector<4x8x8xf32> -> vector<4x8x8xf32>
    "tpu.trace_stop"() : () -> ()
    %24 = tpu.transpose %23, [1, 0, 2] : vector<4x8x8xf32> -> vector<8x4x8xf32>
    %25 = vector.shape_cast %24 : vector<8x4x8xf32> to vector<8x32xf32>
    %c0_15 = arith.constant 0 : index
    %c0_16 = arith.constant 0 : index
    %26 = vector.load %arg5[%c0_15, %c0_16] : memref<32x32xf32, #tpu.memory_space<vmem>>, vector<32x32xf32>
    %cst_17 = arith.constant dense<0.000000e+00> : vector<8x32xf32>
    %27 = tpu.matmul %25, %26, %cst_17 {dimension_numbers = #tpu.dot_dimension_numbers<[1], [0], [0], [1], [0, 0, 1, 1], [], []>} : vector<8x32xf32>, vector<32x32xf32>, vector<8x32xf32> -> vector<8x32xf32>
    %c0_18 = arith.constant 0 : index
    %c0_19 = arith.constant 0 : index
    %28 = vector.load %arg6[%c0_18, %c0_19] : memref<1x32xf32, #tpu.memory_space<vmem>>, vector<1x32xf32>
    %29 = vector.shape_cast %28 : vector<1x32xf32> to vector<32xf32>
    %30 = vector.shape_cast %29 : vector<32xf32> to vector<1x32xf32>
    %31 = vector.broadcast %30 : vector<1x32xf32> to vector<8x32xf32>
    %32 = arith.addf %27, %31 : vector<8x32xf32>
    %c0_20 = arith.constant 0 : index
    %33 = arith.index_cast %4 : i32 to index
    %c0_21 = arith.constant 0 : index
    %34 = vector.load %arg2[%c0_20, %33, %c0_21] : memref<1x8x32xf32, #tpu.memory_space<vmem>>, vector<1x8x32xf32>
    %35 = vector.shape_cast %34 : vector<1x8x32xf32> to vector<8x32xf32>
    %36 = arith.addf %32, %35 : vector<8x32xf32>
    %cst_22 = arith.constant dense<0.000000e+00> : vector<8xf32>
    %37 = vector.multi_reduction <add>, %36, %cst_22 [1] : vector<8x32xf32> to vector<8xf32>
    %38 = vector.shape_cast %37 : vector<8xf32> to vector<8x1xf32>
    %cst_23 = arith.constant 3.200000e+01 : f32
    %39 = vector.broadcast %cst_23 : f32 to vector<8x1xf32>
    %40 = arith.divf %38, %39 : vector<8x1xf32>
    %41 = vector.broadcast %40 : vector<8x1xf32> to vector<8x32xf32>
    %42 = arith.subf %36, %41 : vector<8x32xf32>
    %43 = arith.mulf %42, %42 : vector<8x32xf32>
    %cst_24 = arith.constant dense<0.000000e+00> : vector<8xf32>
    %44 = vector.multi_reduction <add>, %43, %cst_24 [1] : vector<8x32xf32> to vector<8xf32>
    %45 = vector.shape_cast %44 : vector<8xf32> to vector<8x1xf32>
    %cst_25 = arith.constant 3.200000e+01 : f32
    %46 = vector.broadcast %cst_25 : f32 to vector<8x1xf32>
    %47 = arith.divf %45, %46 : vector<8x1xf32>
    %48 = vector.broadcast %40 : vector<8x1xf32> to vector<8x32xf32>
    %49 = arith.subf %36, %48 : vector<8x32xf32>
    %cst_26 = arith.constant 9.99999974E-6 : f32
    %50 = vector.broadcast %cst_26 : f32 to vector<8x1xf32>
    %51 = arith.addf %47, %50 : vector<8x1xf32>
    %52 = math.rsqrt %51 : vector<8x1xf32>
    %53 = vector.broadcast %52 : vector<8x1xf32> to vector<8x32xf32>
    %54 = arith.mulf %49, %53 : vector<8x32xf32>
    %c0_27 = arith.constant 0 : index
    %c0_28 = arith.constant 0 : index
    %55 = vector.load %arg7[%c0_27, %c0_28] : memref<1x32xf32, #tpu.memory_space<vmem>>, vector<1x32xf32>
    %56 = vector.shape_cast %55 : vector<1x32xf32> to vector<32xf32>
    %57 = vector.shape_cast %56 : vector<32xf32> to vector<1x32xf32>
    %58 = vector.broadcast %57 : vector<1x32xf32> to vector<8x32xf32>
    %59 = arith.mulf %54, %58 : vector<8x32xf32>
    %c0_29 = arith.constant 0 : index
    %c0_30 = arith.constant 0 : index
    %60 = vector.load %arg8[%c0_29, %c0_30] : memref<1x32xf32, #tpu.memory_space<vmem>>, vector<1x32xf32>
    %61 = vector.shape_cast %60 : vector<1x32xf32> to vector<32xf32>
    %62 = vector.shape_cast %61 : vector<32xf32> to vector<1x32xf32>
    %63 = vector.broadcast %62 : vector<1x32xf32> to vector<8x32xf32>
    %64 = arith.addf %59, %63 : vector<8x32xf32>
    %c0_31 = arith.constant 0 : index
    %c0_32 = arith.constant 0 : index
    %c0_33 = arith.constant 0 : index
    %65 = vector.load %arg9[%c0_31, %c0_32, %c0_33] : memref<1x8x32xf32, #tpu.memory_space<vmem>>, vector<1x8x32xf32>
    %66 = vector.shape_cast %65 : vector<1x8x32xf32> to vector<8x32xf32>
    %67 = vector.shape_cast %64 : vector<8x32xf32> to vector<1x8x32xf32>
    tpu.vector_store %arg9[%c0_31, %c0_32, %c0_33], %67 {strides = array<i32>} : memref<1x8x32xf32, #tpu.memory_space<vmem>>, vector<1x8x32xf32>,
    return
  }
  func.func @transform_0(%arg0: i32, %arg1: i32) -> (i32, i32, i32) {
    %c0_i32 = arith.constant 0 : i32
    %c0_i32_0 = arith.constant 0 : i32
    %c0_i32_1 = arith.constant 0 : i32
    return %arg0, %c0_i32, %c0_i32_0 : i32, i32, i32
  }
  func.func @transform_1(%arg0: i32, %arg1: i32) -> (i32, i32) {
    %c0_i32 = arith.constant 0 : i32
    %c0_i32_0 = arith.constant 0 : i32
    %c0_i32_1 = arith.constant 0 : i32
    return %c0_i32, %c0_i32_0 : i32, i32
  }
  func.func @transform_2(%arg0: i32, %arg1: i32) -> (i32, i32) {
    %c0_i32 = arith.constant 0 : i32
    %c0_i32_0 = arith.constant 0 : i32
    %c0_i32_1 = arith.constant 0 : i32
    return %c0_i32, %c0_i32_0 : i32, i32
  }
  func.func @transform_3(%arg0: i32, %arg1: i32) -> (i32, i32) {
    %c0_i32 = arith.constant 0 : i32
    %c0_i32_0 = arith.constant 0 : i32
    %c0_i32_1 = arith.constant 0 : i32
    return %c0_i32, %c0_i32_0 : i32, i32
  }
  func.func @transform_4(%arg0: i32, %arg1: i32) -> (i32, i32) {
    %c0_i32 = arith.constant 0 : i32
    %c0_i32_0 = arith.constant 0 : i32
    %c0_i32_1 = arith.constant 0 : i32
    return %c0_i32, %c0_i32_0 : i32, i32
  }
  func.func @transform_5(%arg0: i32, %arg1: i32) -> (i32, i32) {
    %c0_i32 = arith.constant 0 : i32
    %c0_i32_0 = arith.constant 0 : i32
    %c0_i32_1 = arith.constant 0 : i32
    return %c0_i32, %c0_i32_0 : i32, i32
  }
  func.func @transform_6(%arg0: i32, %arg1: i32) -> (i32, i32) {
    %c0_i32 = arith.constant 0 : i32
    %c0_i32_0 = arith.constant 0 : i32
    %c0_i32_1 = arith.constant 0 : i32
    return %c0_i32, %c0_i32_0 : i32, i32
  }
  func.func @transform_7(%arg0: i32, %arg1: i32) -> (i32, i32, i32) {
    %c0_i32 = arith.constant 0 : i32
    %c0_i32_0 = arith.constant 0 : i32
    return %arg0, %arg1, %c0_i32 : i32, i32, i32
  }
  func.func @transform_8(%arg0: i32, %arg1: i32) -> (i32, i32, i32, i32) {
    %c0_i32 = arith.constant 0 : i32
    %c0_i32_0 = arith.constant 0 : i32
    %c0_i32_1 = arith.constant 0 : i32
    return %arg0, %c0_i32, %arg1, %c0_i32_0 : i32, i32, i32, i32
  }
}

module attributes {stable_mosaic.version = 11 : i64} {
  func.func @mha_kernel(%arg0: i32, %arg1: i32, %arg2: memref<1x8x32xf32, #tpu.memory_space<vmem>>, %arg3: memref<32x96xf32, #tpu.memory_space<vmem>>, %arg4: memref<1x96xf32, #tpu.memory_space<vmem>>, %arg5: memref<32x32xf32, #tpu.memory_space<vmem>>, %arg6: memref<1x32xf32, #tpu.memory_space<vmem>>, %arg7: memref<1x32xf32, #tpu.memory_space<vmem>>, %arg8: memref<1x32xf32, #tpu.memory_space<vmem>>, %arg9: memref<1x8x32xf32, #tpu.memory_space<vmem>>, %arg10: memref<1x4x8x8xf32, #tpu.memory_space<vmem>>, %arg11: memref<4x8x8xf32, #tpu.memory_space<vmem>>, %arg12: memref<4x8x8xf32, #tpu.memory_space<vmem>>, %arg13: memref<4x8x8xf32, #tpu.memory_space<vmem>>) attributes {dimension_semantics = [#tpu.dimension_semantics<parallel>, #tpu.dimension_semantics<arbitrary>], iteration_bounds = array<i64: 2, 1>, scalar_prefetch = 0 : i64, scratch_operands = 3 : i64, tpu.core_type = #tpu.core_type<tc>, window_params = [{transform_indices = @transform_0, window_bounds = array<i64: 1, 8, 32>}, {pipeline_mode = #tpu.pipeline_mode<synchronous>, transform_indices = @transform_1, window_bounds = array<i64: 32, 96>}, {pipeline_mode = #tpu.pipeline_mode<synchronous>, transform_indices = @transform_2, window_bounds = array<i64: 1, 96>}, {pipeline_mode = #tpu.pipeline_mode<synchronous>, transform_indices = @transform_3, window_bounds = array<i64: 32, 32>}, {pipeline_mode = #tpu.pipeline_mode<synchronous>, transform_indices = @transform_4, window_bounds = array<i64: 1, 32>}, {pipeline_mode = #tpu.pipeline_mode<synchronous>, transform_indices = @transform_5, window_bounds = array<i64: 1, 32>}, {pipeline_mode = #tpu.pipeline_mode<synchronous>, transform_indices = @transform_6, window_bounds = array<i64: 1, 32>}, {transform_indices = @transform_7, window_bounds = array<i64: 1, 8, 32>}, {transform_indices = @transform_8, window_bounds = array<i64: 1, 4, 8, 8>}]} {
    %c0_i32 = arith.constant 0 : i32
    %0 = arith.cmpi eq, %arg1, %c0_i32 : i32
    %1 = arith.extui %0 : i1 to i32
    %c0_i32_0 = arith.constant 0 : i32
    %2 = arith.cmpi ne, %1, %c0_i32_0 : i32
    scf.if %2 {
      %c0_34 = arith.constant 0 : index
      %c0_35 = arith.constant 0 : index
      %c0_36 = arith.constant 0 : index
      %68 = vector.load %arg2[%c0_34, %c0_35, %c0_36] : memref<1x8x32xf32, #tpu.memory_space<vmem>>, vector<1x8x32xf32>
      %69 = vector.shape_cast %68 : vector<1x8x32xf32> to vector<8x32xf32>
      %c0_37 = arith.constant 0 : index
      %c0_38 = arith.constant 0 : index
      %70 = vector.load %arg3[%c0_37, %c0_38] : memref<32x96xf32, #tpu.memory_space<vmem>>, vector<32x96xf32>
      %cst_39 = arith.constant dense<0.000000e+00> : vector<8x96xf32>
      %71 = tpu.matmul %69, %70, %cst_39 {dimension_numbers = #tpu.dot_dimension_numbers<[1], [0], [0], [1], [0, 0, 1, 1], [], []>} : vector<8x32xf32>, vector<32x96xf32>, vector<8x96xf32> -> vector<8x96xf32>
      %c0_40 = arith.constant 0 : index
      %c0_41 = arith.constant 0 : index
      %72 = vector.load %arg4[%c0_40, %c0_41] : memref<1x96xf32, #tpu.memory_space<vmem>>, vector<1x96xf32>
      %73 = vector.shape_cast %72 : vector<1x96xf32> to vector<96xf32>
      %74 = vector.shape_cast %73 : vector<96xf32> to vector<1x96xf32>
      %75 = vector.broadcast %74 : vector<1x96xf32> to vector<8x96xf32>
      %76 = arith.addf %71, %75 : vector<8x96xf32>
      %77 = vector.extract_strided_slice %76 {offsets = [0, 0], sizes = [8, 32], strides = [1, 1]} : vector<8x96xf32> to vector<8x32xf32>
      %78 = vector.shape_cast %77 : vector<8x32xf32> to vector<8x4x8xf32>
      %79 = tpu.transpose %78, [1, 0, 2] : vector<8x4x8xf32> -> vector<4x8x8xf32>
      %c0_42 = arith.constant 0 : index
      %c0_43 = arith.constant 0 : index
      %c0_44 = arith.constant 0 : index
      %80 = vector.load %arg11[%c0_42, %c0_43, %c0_44] : memref<4x8x8xf32, #tpu.memory_space<vmem>>, vector<4x8x8xf32>
      tpu.vector_store %arg11[%c0_42, %c0_43, %c0_44], %79 {strides = array<i32>} : memref<4x8x8xf32, #tpu.memory_space<vmem>>, vector<4x8x8xf32>,
      %81 = vector.extract_strided_slice %76 {offsets = [0, 32], sizes = [8, 32], strides = [1, 1]} : vector<8x96xf32> to vector<8x32xf32>
      %82 = vector.shape_cast %81 : vector<8x32xf32> to vector<8x4x8xf32>
      %83 = tpu.transpose %82, [1, 0, 2] : vector<8x4x8xf32> -> vector<4x8x8xf32>
      %c0_45 = arith.constant 0 : index
      %c0_46 = arith.constant 0 : index
      %c0_47 = arith.constant 0 : index
      %84 = vector.load %arg12[%c0_45, %c0_46, %c0_47] : memref<4x8x8xf32, #tpu.memory_space<vmem>>, vector<4x8x8xf32>
      tpu.vector_store %arg12[%c0_45, %c0_46, %c0_47], %83 {strides = array<i32>} : memref<4x8x8xf32, #tpu.memory_space<vmem>>, vector<4x8x8xf32>,
      %85 = vector.extract_strided_slice %76 {offsets = [0, 64], sizes = [8, 32], strides = [1, 1]} : vector<8x96xf32> to vector<8x32xf32>
      %86 = vector.shape_cast %85 : vector<8x32xf32> to vector<8x4x8xf32>
      %87 = tpu.transpose %86, [1, 0, 2] : vector<8x4x8xf32> -> vector<4x8x8xf32>
      %c0_48 = arith.constant 0 : index
      %c0_49 = arith.constant 0 : index
      %c0_50 = arith.constant 0 : index
      %88 = vector.load %arg13[%c0_48, %c0_49, %c0_50] : memref<4x8x8xf32, #tpu.memory_space<vmem>>, vector<4x8x8xf32>
      tpu.vector_store %arg13[%c0_48, %c0_49, %c0_50], %87 {strides = array<i32>} : memref<4x8x8xf32, #tpu.memory_space<vmem>>, vector<4x8x8xf32>,
    } else {
    }
    %c8_i32 = arith.constant 8 : i32
    %3 = arith.muli %arg1, %c8_i32 : i32
    %4 = tpu.assume_multiple %3, 8 : i32
    %c0 = arith.constant 0 : index
    %5 = arith.index_cast %4 : i32 to index
    %c0_1 = arith.constant 0 : index
    %6 = vector.load %arg11[%c0, %5, %c0_1] : memref<4x8x8xf32, #tpu.memory_space<vmem>>, vector<4x8x8xf32>
    %c0_2 = arith.constant 0 : index
    %c0_3 = arith.constant 0 : index
    %c0_4 = arith.constant 0 : index
    %7 = vector.load %arg12[%c0_2, %c0_3, %c0_4] : memref<4x8x8xf32, #tpu.memory_space<vmem>>, vector<4x8x8xf32>
    "tpu.trace_start"() <{level = 10 : i32, message = "hqd,hkd->hqk"}> : () -> ()
    %cst = arith.constant dense<0.000000e+00> : vector<4x8x8xf32>
    %8 = tpu.matmul %6, %7, %cst {dimension_numbers = #tpu.dot_dimension_numbers<[2], [2], [1], [1], [0, 0, 0, 1, 1, 1], [0], [0]>} : vector<4x8x8xf32>, vector<4x8x8xf32>, vector<4x8x8xf32> -> vector<4x8x8xf32>
    "tpu.trace_stop"() : () -> ()
    %cst_5 = arith.constant dense<0xFF800000> : vector<4x8xf32>
    %9 = vector.multi_reduction <maximumf>, %8, %cst_5 [2] : vector<4x8x8xf32> to vector<4x8xf32>
    %10 = vector.shape_cast %9 : vector<4x8xf32> to vector<4x8x1xf32>
    %11 = vector.broadcast %10 : vector<4x8x1xf32> to vector<4x8x8xf32>
    %12 = arith.subf %8, %11 : vector<4x8x8xf32>
    %13 = math.exp %12 : vector<4x8x8xf32>
    %cst_6 = arith.constant dense<0.000000e+00> : vector<4x8xf32>
    %14 = vector.multi_reduction <add>, %13, %cst_6 [2] : vector<4x8x8xf32> to vector<4x8xf32>
    %15 = vector.shape_cast %14 : vector<4x8xf32> to vector<4x8x1xf32>
    %16 = tpu.reciprocal %15 {approx = true} : vector<4x8x1xf32> -> vector<4x8x1xf32>
    %17 = vector.broadcast %16 : vector<4x8x1xf32> to vector<4x8x8xf32>
    %18 = arith.mulf %13, %17 : vector<4x8x8xf32>
    %c0_7 = arith.constant 0 : index
    %c0_8 = arith.constant 0 : index
    %c0_9 = arith.constant 0 : index
    %c0_10 = arith.constant 0 : index
    %19 = vector.load %arg10[%c0_7, %c0_8, %c0_9, %c0_10] : memref<1x4x8x8xf32, #tpu.memory_space<vmem>>, vector<1x4x8x8xf32>
    %20 = vector.shape_cast %19 : vector<1x4x8x8xf32> to vector<4x8x8xf32>
    %21 = vector.shape_cast %18 : vector<4x8x8xf32> to vector<1x4x8x8xf32>
    tpu.vector_store %arg10[%c0_7, %c0_8, %c0_9, %c0_10], %21 {strides = array<i32>} : memref<1x4x8x8xf32, #tpu.memory_space<vmem>>, vector<1x4x8x8xf32>,
    %c0_11 = arith.constant 0 : index
    %c0_12 = arith.constant 0 : index
    %c0_13 = arith.constant 0 : index
    %22 = vector.load %arg13[%c0_11, %c0_12, %c0_13] : memref<4x8x8xf32, #tpu.memory_space<vmem>>, vector<4x8x8xf32>
    "tpu.trace_start"() <{level = 10 : i32, message = "hqk,hkd->hqd"}> : () -> ()
    %cst_14 = arith.constant dense<0.000000e+00> : vector<4x8x8xf32>
    %23 = tpu.matmul %18, %22, %cst_14 {dimension_numbers = #tpu.dot_dimension_numbers<[2], [1], [1], [2], [0, 0, 0, 1, 1, 2], [0], [0]>} : vector<4x8x8xf32>, vector<4x8x8xf32>, vector<4x8x8xf32> -> vector<4x8x8xf32>
    "tpu.trace_stop"() : () -> ()
    %24 = tpu.transpose %23, [1, 0, 2] : vector<4x8x8xf32> -> vector<8x4x8xf32>
    %25 = vector.shape_cast %24 : vector<8x4x8xf32> to vector<8x32xf32>
    %c0_15 = arith.constant 0 : index
    %c0_16 = arith.constant 0 : index
    %26 = vector.load %arg5[%c0_15, %c0_16] : memref<32x32xf32, #tpu.memory_space<vmem>>, vector<32x32xf32>
    %cst_17 = arith.constant dense<0.000000e+00> : vector<8x32xf32>
    %27 = tpu.matmul %25, %26, %cst_17 {dimension_numbers = #tpu.dot_dimension_numbers<[1], [0], [0], [1], [0, 0, 1, 1], [], []>} : vector<8x32xf32>, vector<32x32xf32>, vector<8x32xf32> -> vector<8x32xf32>
    %c0_18 = arith.constant 0 : index
    %c0_19 = arith.constant 0 : index
    %28 = vector.load %arg6[%c0_18, %c0_19] : memref<1x32xf32, #tpu.memory_space<vmem>>, vector<1x32xf32>
    %29 = vector.shape_cast %28 : vector<1x32xf32> to vector<32xf32>
    %30 = vector.shape_cast %29 : vector<32xf32> to vector<1x32xf32>
    %31 = vector.broadcast %30 : vector<1x32xf32> to vector<8x32xf32>
    %32 = arith.addf %27, %31 : vector<8x32xf32>
    %c0_20 = arith.constant 0 : index
    %33 = arith.index_cast %4 : i32 to index
    %c0_21 = arith.constant 0 : index
    %34 = vector.load %arg2[%c0_20, %33, %c0_21] : memref<1x8x32xf32, #tpu.memory_space<vmem>>, vector<1x8x32xf32>
    %35 = vector.shape_cast %34 : vector<1x8x32xf32> to vector<8x32xf32>
    %36 = arith.addf %32, %35 : vector<8x32xf32>
    %cst_22 = arith.constant dense<0.000000e+00> : vector<8xf32>
    %37 = vector.multi_reduction <add>, %36, %cst_22 [1] : vector<8x32xf32> to vector<8xf32>
    %38 = vector.shape_cast %37 : vector<8xf32> to vector<8x1xf32>
    %cst_23 = arith.constant 3.200000e+01 : f32
    %39 = vector.broadcast %cst_23 : f32 to vector<8x1xf32>
    %40 = arith.divf %38, %39 : vector<8x1xf32>
    %41 = vector.broadcast %40 : vector<8x1xf32> to vector<8x32xf32>
    %42 = arith.subf %36, %41 : vector<8x32xf32>
    %43 = arith.mulf %42, %42 : vector<8x32xf32>
    %cst_24 = arith.constant dense<0.000000e+00> : vector<8xf32>
    %44 = vector.multi_reduction <add>, %43, %cst_24 [1] : vector<8x32xf32> to vector<8xf32>
    %45 = vector.shape_cast %44 : vector<8xf32> to vector<8x1xf32>
    %cst_25 = arith.constant 3.200000e+01 : f32
    %46 = vector.broadcast %cst_25 : f32 to vector<8x1xf32>
    %47 = arith.divf %45, %46 : vector<8x1xf32>
    %48 = vector.broadcast %40 : vector<8x1xf32> to vector<8x32xf32>
    %49 = arith.subf %36, %48 : vector<8x32xf32>
    %cst_26 = arith.constant 9.99999974E-6 : f32
    %50 = vector.broadcast %cst_26 : f32 to vector<8x1xf32>
    %51 = arith.addf %47, %50 : vector<8x1xf32>
    %52 = math.rsqrt %51 : vector<8x1xf32>
    %53 = vector.broadcast %52 : vector<8x1xf32> to vector<8x32xf32>
    %54 = arith.mulf %49, %53 : vector<8x32xf32>
    %c0_27 = arith.constant 0 : index
    %c0_28 = arith.constant 0 : index
    %55 = vector.load %arg7[%c0_27, %c0_28] : memref<1x32xf32, #tpu.memory_space<vmem>>, vector<1x32xf32>
    %56 = vector.shape_cast %55 : vector<1x32xf32> to vector<32xf32>
    %57 = vector.shape_cast %56 : vector<32xf32> to vector<1x32xf32>
    %58 = vector.broadcast %57 : vector<1x32xf32> to vector<8x32xf32>
    %59 = arith.mulf %54, %58 : vector<8x32xf32>
    %c0_29 = arith.constant 0 : index
    %c0_30 = arith.constant 0 : index
    %60 = vector.load %arg8[%c0_29, %c0_30] : memref<1x32xf32, #tpu.memory_space<vmem>>, vector<1x32xf32>
    %61 = vector.shape_cast %60 : vector<1x32xf32> to vector<32xf32>
    %62 = vector.shape_cast %61 : vector<32xf32> to vector<1x32xf32>
    %63 = vector.broadcast %62 : vector<1x32xf32> to vector<8x32xf32>
    %64 = arith.addf %59, %63 : vector<8x32xf32>
    %c0_31 = arith.constant 0 : index
    %c0_32 = arith.constant 0 : index
    %c0_33 = arith.constant 0 : index
    %65 = vector.load %arg9[%c0_31, %c0_32, %c0_33] : memref<1x8x32xf32, #tpu.memory_space<vmem>>, vector<1x8x32xf32>
    %66 = vector.shape_cast %65 : vector<1x8x32xf32> to vector<8x32xf32>
    %67 = vector.shape_cast %64 : vector<8x32xf32> to vector<1x8x32xf32>
    tpu.vector_store %arg9[%c0_31, %c0_32, %c0_33], %67 {strides = array<i32>} : memref<1x8x32xf32, #tpu.memory_space<vmem>>, vector<1x8x32xf32>,
    return
  }
  func.func @transform_0(%arg0: i32, %arg1: i32) -> (i32, i32, i32) {
    %c0_i32 = arith.constant 0 : i32
    %c0_i32_0 = arith.constant 0 : i32
    %c0_i32_1 = arith.constant 0 : i32
    return %arg0, %c0_i32, %c0_i32_0 : i32, i32, i32
  }
  func.func @transform_1(%arg0: i32, %arg1: i32) -> (i32, i32) {
    %c0_i32 = arith.constant 0 : i32
    %c0_i32_0 = arith.constant 0 : i32
    %c0_i32_1 = arith.constant 0 : i32
    return %c0_i32, %c0_i32_0 : i32, i32
  }
  func.func @transform_2(%arg0: i32, %arg1: i32) -> (i32, i32) {
    %c0_i32 = arith.constant 0 : i32
    %c0_i32_0 = arith.constant 0 : i32
    %c0_i32_1 = arith.constant 0 : i32
    return %c0_i32, %c0_i32_0 : i32, i32
  }
  func.func @transform_3(%arg0: i32, %arg1: i32) -> (i32, i32) {
    %c0_i32 = arith.constant 0 : i32
    %c0_i32_0 = arith.constant 0 : i32
    %c0_i32_1 = arith.constant 0 : i32
    return %c0_i32, %c0_i32_0 : i32, i32
  }
  func.func @transform_4(%arg0: i32, %arg1: i32) -> (i32, i32) {
    %c0_i32 = arith.constant 0 : i32
    %c0_i32_0 = arith.constant 0 : i32
    %c0_i32_1 = arith.constant 0 : i32
    return %c0_i32, %c0_i32_0 : i32, i32
  }
  func.func @transform_5(%arg0: i32, %arg1: i32) -> (i32, i32) {
    %c0_i32 = arith.constant 0 : i32
    %c0_i32_0 = arith.constant 0 : i32
    %c0_i32_1 = arith.constant 0 : i32
    return %c0_i32, %c0_i32_0 : i32, i32
  }
  func.func @transform_6(%arg0: i32, %arg1: i32) -> (i32, i32) {
    %c0_i32 = arith.constant 0 : i32
    %c0_i32_0 = arith.constant 0 : i32
    %c0_i32_1 = arith.constant 0 : i32
    return %c0_i32, %c0_i32_0 : i32, i32
  }
  func.func @transform_7(%arg0: i32, %arg1: i32) -> (i32, i32, i32) {
    %c0_i32 = arith.constant 0 : i32
    %c0_i32_0 = arith.constant 0 : i32
    return %arg0, %arg1, %c0_i32 : i32, i32, i32
  }
  func.func @transform_8(%arg0: i32, %arg1: i32) -> (i32, i32, i32, i32) {
    %c0_i32 = arith.constant 0 : i32
    %c0_i32_0 = arith.constant 0 : i32
    %c0_i32_1 = arith.constant 0 : i32
    return %arg0, %c0_i32, %arg1, %c0_i32_0 : i32, i32, i32, i32
  }
}

</mosaic_0001>

<llo_original>
// kernel: tpu_custom_call.1
$region0: #{tpu_custom_call.1}
  #allocation0 [shape = 'u32[]', space=smem, size = 0x4, offset = 0x4, fixed_abs, tag = 'smem constant byte address 0x4 - core index']
  #allocation1 [shape = 'u32[72,128]{1,0:T(1,128)}', space=vmem, size = 0x9000, scoped, tag = 'internal scratch']
  #allocation2 [shape = 'f32[4,8,8]{2,1,0:T(8,128)}', space=vmem, size = 0x4000, scoped, tag = 'scratch operand']
  #allocation3 [shape = 'f32[4,8,8]{2,1,0:T(8,128)}', space=vmem, size = 0x4000, scoped, tag = 'scratch operand']
  #allocation4 [shape = 'f32[4,8,8]{2,1,0:T(8,128)}', space=vmem, size = 0x4000, scoped, tag = 'scratch operand']
  %s0 = inlined_call_operand.hbm [shape: f32[2,8,32], index: 0, kind: input, shape index: {}]
  %s1 = inlined_call_operand.hbm [shape: f32[32,96], index: 1, kind: input, shape index: {}]
  %s2 = inlined_call_operand.vmem [shape: f32[1,96], index: 2, kind: input, shape index: {}]
  %s3 = inlined_call_operand.hbm [shape: f32[32,32], index: 3, kind: input, shape index: {}]
  %s4 = inlined_call_operand.vmem [shape: f32[1,32], index: 4, kind: input, shape index: {}]
  %s5 = inlined_call_operand.vmem [shape: f32[1,32], index: 5, kind: input, shape index: {}]
  %s6 = inlined_call_operand.vmem [shape: f32[1,32], index: 6, kind: input, shape index: {}]
  %s7 = inlined_call_operand.hbm [shape: f32[2,8,32], index: 7, kind: output, shape index: {0}]
  %s8 = inlined_call_operand.hbm [shape: f32[2,4,8,8], index: 8, kind: output, shape index: {1}]
  %9 = xla_tuple %s7, %s8
  %s10 = sld [smem:[#allocation0]]
  $region85: #{tpu_custom_call.1} parent=0
    _
  %s12 = ssub.s32 1, %s10
  %s13 = scalar_select 0, %s12, %s10
  $region1: #{tpu_custom_call.1} parent=0
    #allocation5 [shape = 'u8[8192]{0}', space=vmem, size = 0x2000, scoped, tag = 'input window, operand 0']
    #allocation6 [shape = 's32[2]{0}', space=sflag, size = 0x8, scoped, tag = 'scoped memory for tpu_custom_call.1']
    #allocation7 [shape = 's32[2]{0}', space=sflag, size = 0x8, scoped, tag = 'scoped memory for tpu_custom_call.1']
    #allocation8 [shape = 'u8[16384]{0}', space=vmem, size = 0x4000, scoped, tag = 'input window, operand 1, single buffered']
    #allocation9 [shape = 's32[1]{0}', space=sflag, size = 0x4, scoped, tag = 'scoped memory for tpu_custom_call.1']
    #allocation10 [shape = 'u8[16384]{0}', space=vmem, size = 0x4000, scoped, tag = 'input window, operand 3, single buffered']
    #allocation11 [shape = 'u8[8192]{0}', space=vmem, size = 0x2000, scoped, tag = 'output window, operand 0']
    #allocation12 [shape = 'u8[32768]{0}', space=vmem, size = 0x8000, scoped, tag = 'output window, operand 1']
    #allocation13 [shape = 's32[2]{0}', space=sflag, size = 0x8, scoped, tag = 'scoped memory for tpu_custom_call.1']
    %14 = vsyncpa [#allocation6], 0
    %s15 = scalar_lea.sflag [#allocation6], 1
    %16 = vsyncpa %s15, 0
    %17 = vsyncpa [#allocation9], 0
    %18 = vsyncpa [#allocation7], 0
    %s19 = scalar_lea.sflag [#allocation7], 1
    %20 = vsyncpa %s19, 0
    %21 = vsyncpa [#allocation13], 0
    %s22 = scalar_lea.sflag [#allocation13], 1
    %23 = vsyncpa %s22, 0
    loop: start=0, step=1, limit=4
    $region2: #{tpu_custom_call.1} parent=1 // loop_pre_header
      _
    $region3: #{tpu_custom_call.1} parent=1 // loop_header
      %s25 = sphi 0, %s29
      %p26 = scmp.ge.s32.totalorder %s25, 4
      %s32 = sphi 0, %s44
      %s33 = sphi 0, %s40
      %s34 = sphi 0, %s32
      %s35 = sphi 0, %s33
      %s36 = sphi 0, %s34
      %s37 = sphi 0, %s35
      %s47 = sphi 0, %s49
      %s50 = sphi 0, %s47
      %s51 = sphi 0, %s50
      %s67 = sphi 0, %s51
      %s71 = sphi 0, %s71
      %s73 = sphi 0, %s71
      %s74 = sphi 0, %s73
      %s88 = sphi 0, %s74
      %s92 = sphi 0, %s92
      %s94 = sphi 0, %s92
      %s95 = sphi 0, %s94
      %s109 = sphi 0, %s95
      %s113 = sphi 0, %s113
      %s115 = sphi 0, %s113
      %s116 = sphi 0, %s115
      %s130 = sphi 0, %s116
      %s134 = sphi 0, %s134
      %s136 = sphi 0, %s134
      %s137 = sphi 0, %s136
      %s151 = sphi 0, %s137
      %s155 = sphi 0, %s155
      %s157 = sphi 0, %s155
      %s158 = sphi 0, %s157
      %s172 = sphi 0, %s158
      %s176 = sphi 0, %s176
      %s178 = sphi 0, %s176
      %s179 = sphi 0, %s178
      %s193 = sphi 0, %s179
      %s201 = sphi 0, %s203
      %s204 = sphi 0, %s201
      %s205 = sphi 0, %s204
      %s221 = sphi 0, %s205
      %s229 = sphi 0, %s231
      %s232 = sphi 0, %s229
      %s233 = sphi 0, %s232
      %s249 = sphi 0, %s233
    $region4: #{tpu_custom_call.1} parent=1 // loop_header_branch
      %28 = sbr.rel (%p26) target = $region8
    $region5: #{tpu_custom_call.1} parent=1 // loop_body
      %s30 = ssub.s32 %s25, 1
      %s31 = ssub.s32 %s25, 2
      %s38 = sadd.s32 1, %s33
      %p39 = scmp.ge.s32.totalorder %s38, 1
      %s40 = scalar_select %p39, 0, %s38
      %s41 = sadd.s32 1, %s32
      %s42 = scalar_select %p39, %s41, %s32
      %p43 = scmp.ge.s32.totalorder %s42, 2
      %s44 = scalar_select %p43, 0, %s42
      %s45 = ssub.s32 %s32, %s44
      %p46 = scmp.eq.s32.totalorder %s45, 0
      %s48 = sadd.s32 %s47, 1
      %s49 = scalar_select %p46, %s47, %s48
      %p52 = pneg %p46
      %p53 = scmp.eq.s32.totalorder %s25, 1
      %p54 = por %p52, %p53
      %p55 = scmp.ne.s32.totalorder %s47, %s50
      %p56 = scmp.eq.s32.totalorder %s25, 0
      %p57 = por %p55, %p56
      %p58 = scmp.ne.s32.totalorder %s47, %s50
      %p59 = scmp.eq.s32.totalorder %s30, 1
      %p60 = por %p58, %p59
      %p61 = scmp.ne.s32.totalorder %s50, %s51
      %p62 = scmp.eq.s32.totalorder %s30, 0
      %p63 = por %p61, %p62
      %p64 = scmp.ne.s32.totalorder %s50, %s51
      %p65 = scmp.eq.s32.totalorder %s31, 1
      %p66 = por %p64, %p65
      %p68 = scmp.ne.s32.totalorder %s51, %s67
      %p69 = scmp.eq.s32.totalorder %s31, 0
      %p70 = por %p68, %p69
      %s72 = sadd.s32 %s71, 1
      %p75 = scmp.eq.s32.totalorder %s25, 1
      %p76 = scmp.ne.s32.totalorder %s71, %s73
      %p77 = scmp.eq.s32.totalorder %s25, 0
      %p78 = por %p76, %p77
      %p79 = scmp.ne.s32.totalorder %s71, %s73
      %p80 = scmp.eq.s32.totalorder %s30, 1
      %p81 = por %p79, %p80
      %p82 = scmp.ne.s32.totalorder %s73, %s74
      %p83 = scmp.eq.s32.totalorder %s30, 0
      %p84 = por %p82, %p83
      %p85 = scmp.ne.s32.totalorder %s73, %s74
      %p86 = scmp.eq.s32.totalorder %s31, 1
      %p87 = por %p85, %p86
      %p89 = scmp.ne.s32.totalorder %s74, %s88
      %p90 = scmp.eq.s32.totalorder %s31, 0
      %p91 = por %p89, %p90
      %s93 = sadd.s32 %s92, 1
      %p96 = scmp.eq.s32.totalorder %s25, 1
      %p97 = scmp.ne.s32.totalorder %s92, %s94
      %p98 = scmp.eq.s32.totalorder %s25, 0
      %p99 = por %p97, %p98
      %p100 = scmp.ne.s32.totalorder %s92, %s94
      %p101 = scmp.eq.s32.totalorder %s30, 1
      %p102 = por %p100, %p101
      %p103 = scmp.ne.s32.totalorder %s94, %s95
      %p104 = scmp.eq.s32.totalorder %s30, 0
      %p105 = por %p103, %p104
      %p106 = scmp.ne.s32.totalorder %s94, %s95
      %p107 = scmp.eq.s32.totalorder %s31, 1
      %p108 = por %p106, %p107
      %p110 = scmp.ne.s32.totalorder %s95, %s109
      %p111 = scmp.eq.s32.totalorder %s31, 0
      %p112 = por %p110, %p111
      %s114 = sadd.s32 %s113, 1
      %p117 = scmp.eq.s32.totalorder %s25, 1
      %p118 = scmp.ne.s32.totalorder %s113, %s115
      %p119 = scmp.eq.s32.totalorder %s25, 0
      %p120 = por %p118, %p119
      %p121 = scmp.ne.s32.totalorder %s113, %s115
      %p122 = scmp.eq.s32.totalorder %s30, 1
      %p123 = por %p121, %p122
      %p124 = scmp.ne.s32.totalorder %s115, %s116
      %p125 = scmp.eq.s32.totalorder %s30, 0
      %p126 = por %p124, %p125
      %p127 = scmp.ne.s32.totalorder %s115, %s116
      %p128 = scmp.eq.s32.totalorder %s31, 1
      %p129 = por %p127, %p128
      %p131 = scmp.ne.s32.totalorder %s116, %s130
      %p132 = scmp.eq.s32.totalorder %s31, 0
      %p133 = por %p131, %p132
      %s135 = sadd.s32 %s134, 1
      %p138 = scmp.eq.s32.totalorder %s25, 1
      %p139 = scmp.ne.s32.totalorder %s134, %s136
      %p140 = scmp.eq.s32.totalorder %s25, 0
      %p141 = por %p139, %p140
      %p142 = scmp.ne.s32.totalorder %s134, %s136
      %p143 = scmp.eq.s32.totalorder %s30, 1
      %p144 = por %p142, %p143
      %p145 = scmp.ne.s32.totalorder %s136, %s137
      %p146 = scmp.eq.s32.totalorder %s30, 0
      %p147 = por %p145, %p146
      %p148 = scmp.ne.s32.totalorder %s136, %s137
      %p149 = scmp.eq.s32.totalorder %s31, 1
      %p150 = por %p148, %p149
      %p152 = scmp.ne.s32.totalorder %s137, %s151
      %p153 = scmp.eq.s32.totalorder %s31, 0
      %p154 = por %p152, %p153
      %s156 = sadd.s32 %s155, 1
      %p159 = scmp.eq.s32.totalorder %s25, 1
      %p160 = scmp.ne.s32.totalorder %s155, %s157
      %p161 = scmp.eq.s32.totalorder %s25, 0
      %p162 = por %p160, %p161
      %p163 = scmp.ne.s32.totalorder %s155, %s157
      %p164 = scmp.eq.s32.totalorder %s30, 1
      %p165 = por %p163, %p164
      %p166 = scmp.ne.s32.totalorder %s157, %s158
      %p167 = scmp.eq.s32.totalorder %s30, 0
      %p168 = por %p166, %p167
      %p169 = scmp.ne.s32.totalorder %s157, %s158
      %p170 = scmp.eq.s32.totalorder %s31, 1
      %p171 = por %p169, %p170
      %p173 = scmp.ne.s32.totalorder %s158, %s172
      %p174 = scmp.eq.s32.totalorder %s31, 0
      %p175 = por %p173, %p174
      %s177 = sadd.s32 %s176, 1
      %p180 = scmp.eq.s32.totalorder %s25, 1
      %p181 = scmp.ne.s32.totalorder %s176, %s178
      %p182 = scmp.eq.s32.totalorder %s25, 0
      %p183 = por %p181, %p182
      %p184 = scmp.ne.s32.totalorder %s176, %s178
      %p185 = scmp.eq.s32.totalorder %s30, 1
      %p186 = por %p184, %p185
      %p187 = scmp.ne.s32.totalorder %s178, %s179
      %p188 = scmp.eq.s32.totalorder %s30, 0
      %p189 = por %p187, %p188
      %p190 = scmp.ne.s32.totalorder %s178, %s179
      %p191 = scmp.eq.s32.totalorder %s31, 1
      %p192 = por %p190, %p191
      %p194 = scmp.ne.s32.totalorder %s179, %s193
      %p195 = scmp.eq.s32.totalorder %s31, 0
      %p196 = por %p194, %p195
      %s197 = ssub.s32 %s32, %s44
      %s198 = ssub.s32 %s33, %s40
      %s199 = sor.u32 %s197, %s198
      %p200 = scmp.eq.s32.totalorder %s199, 0
      %s202 = sadd.s32 %s201, 1
      %s203 = scalar_select %p200, %s201, %s202
      %p206 = pneg %p200
      %p207 = scmp.eq.s32.totalorder %s25, 1
      %p208 = por %p206, %p207
      %p209 = scmp.ne.s32.totalorder %s201, %s204
      %p210 = scmp.eq.s32.totalorder %s25, 0
      %p211 = por %p209, %p210
      %p212 = scmp.ne.s32.totalorder %s201, %s204
      %p213 = scmp.eq.s32.totalorder %s30, 1
      %p214 = por %p212, %p213
      %p215 = scmp.ne.s32.totalorder %s204, %s205
      %p216 = scmp.eq.s32.totalorder %s30, 0
      %p217 = por %p215, %p216
      %p218 = scmp.ne.s32.totalorder %s204, %s205
      %p219 = scmp.eq.s32.totalorder %s31, 1
      %p220 = por %p218, %p219
      %p222 = scmp.ne.s32.totalorder %s205, %s221
      %p223 = scmp.eq.s32.totalorder %s31, 0
      %p224 = por %p222, %p223
      %s225 = ssub.s32 %s32, %s44
      %s226 = ssub.s32 %s33, %s40
      %s227 = sor.u32 %s225, %s226
      %p228 = scmp.eq.s32.totalorder %s227, 0
      %s230 = sadd.s32 %s229, 1
      %s231 = scalar_select %p228, %s229, %s230
      %p234 = pneg %p228
      %p235 = scmp.eq.s32.totalorder %s25, 1
      %p236 = por %p234, %p235
      %p237 = scmp.ne.s32.totalorder %s229, %s232
      %p238 = scmp.eq.s32.totalorder %s25, 0
      %p239 = por %p237, %p238
      %p240 = scmp.ne.s32.totalorder %s229, %s232
      %p241 = scmp.eq.s32.totalorder %s30, 1
      %p242 = por %p240, %p241
      %p243 = scmp.ne.s32.totalorder %s232, %s233
      %p244 = scmp.eq.s32.totalorder %s30, 0
      %p245 = por %p243, %p244
      %p246 = scmp.ne.s32.totalorder %s232, %s233
      %p247 = scmp.eq.s32.totalorder %s31, 1
      %p248 = por %p246, %p247
      %p250 = scmp.ne.s32.totalorder %s233, %s249
      %p251 = scmp.eq.s32.totalorder %s31, 0
      %p252 = por %p250, %p251
      %p253 = scmp.le.s32.totalorder 1, %s25
      %p254 = scmp.lt.s32.totalorder %s25, 3
      %p255 = pnand %p253, %p254
      %p256 = pneg %p255
      // Predicated region
      $region9: #{tpu_custom_call.1} parent=5 // pred_check
        _
      $region10: #{tpu_custom_call.1} parent=5 // pred_check_branch
        %258 = sbr.rel (%p255) target = $region12
      $region11: #{tpu_custom_call.1} parent=5 // pred_region
        %s259 = ssub.s32 %s25, 1
        // Predicated region
        $region13: #{tpu_custom_call.1} parent=11 // pred_check
          %p260 = pneg %p84
        $region14: #{tpu_custom_call.1} parent=11 // pred_check_branch
          %262 = sbr.rel (%p260) target = $region16
        $region15: #{tpu_custom_call.1} parent=11 // pred_region
          %264 = vsyncadd [#allocation9], 0
          %s265 = sshll.u32 %s1, 4
          %s266 = int_to_ptr.hbm [resolvable:$true] %s265
          %s267 = sshll.u32 [#allocation8], 4
          %s268 = int_to_ptr.vmem [resolvable:$true] %s267
          %273 = dma.hbm_to_vmem [thread:$0]  %s266, 512, %s268, [#allocation9], 128, 128, 8
        $region16: #{tpu_custom_call.1} parent=11 // pred_fallthru
          _
        // Predicated region
        $region17: #{tpu_custom_call.1} parent=11 // pred_check
          %p274 = pneg %p105
        $region18: #{tpu_custom_call.1} parent=11 // pred_check_branch
          %276 = sbr.rel (%p274) target = $region20
        $region19: #{tpu_custom_call.1} parent=11 // pred_region
          _
        $region20: #{tpu_custom_call.1} parent=11 // pred_fallthru
          _
        // Predicated region
        $region21: #{tpu_custom_call.1} parent=11 // pred_check
          %p277 = pneg %p126
        $region22: #{tpu_custom_call.1} parent=11 // pred_check_branch
          %279 = sbr.rel (%p277) target = $region24
        $region23: #{tpu_custom_call.1} parent=11 // pred_region
          %281 = vsyncadd [#allocation9], 0
          %s282 = sshll.u32 %s3, 4
          %s283 = int_to_ptr.hbm [resolvable:$true] %s282
          %s284 = sshll.u32 [#allocation10], 4
          %s285 = int_to_ptr.vmem [resolvable:$true] %s284
          %290 = dma.hbm_to_vmem [thread:$0]  %s283, 512, %s285, [#allocation9], 128, 128, 8
        $region24: #{tpu_custom_call.1} parent=11 // pred_fallthru
          _
        // Predicated region
        $region25: #{tpu_custom_call.1} parent=11 // pred_check
          %p291 = pneg %p147
        $region26: #{tpu_custom_call.1} parent=11 // pred_check_branch
          %293 = sbr.rel (%p291) target = $region28
        $region27: #{tpu_custom_call.1} parent=11 // pred_region
          _
        $region28: #{tpu_custom_call.1} parent=11 // pred_fallthru
          _
        // Predicated region
        $region29: #{tpu_custom_call.1} parent=11 // pred_check
          %p294 = pneg %p168
        $region30: #{tpu_custom_call.1} parent=11 // pred_check_branch
          %296 = sbr.rel (%p294) target = $region32
        $region31: #{tpu_custom_call.1} parent=11 // pred_region
          _
        $region32: #{tpu_custom_call.1} parent=11 // pred_fallthru
          _
        // Predicated region
        $region33: #{tpu_custom_call.1} parent=11 // pred_check
          %p297 = pneg %p189
        $region34: #{tpu_custom_call.1} parent=11 // pred_check_branch
          %299 = sbr.rel (%p297) target = $region36
        $region35: #{tpu_custom_call.1} parent=11 // pred_region
          _
        $region36: #{tpu_custom_call.1} parent=11 // pred_fallthru
          _
      $region12: #{tpu_custom_call.1} parent=5 // pred_fallthru
        _
      %p300 = scmp.lt.s32.totalorder %s25, 2
      // Predicated region
      $region37: #{tpu_custom_call.1} parent=5 // pred_check
        %p301 = pneg %p300
      $region38: #{tpu_custom_call.1} parent=5 // pred_check_branch
        %303 = sbr.rel (%p301) target = $region40
      $region39: #{tpu_custom_call.1} parent=5 // pred_region
        // Predicated region
        $region41: #{tpu_custom_call.1} parent=39 // pred_check
          %p304 = pneg %p57
        $region42: #{tpu_custom_call.1} parent=39 // pred_check_branch
          %306 = sbr.rel (%p304) target = $region44
        $region43: #{tpu_custom_call.1} parent=39 // pred_region
          %s307 = sand.u32 %s47, 1
          %s308 = scalar_lea.sflag [#allocation6], %s307
          %s309 = sand.u32 %s47, 1
          %s310 = smul.addr %s309, 8
          %s311 = scalar_lea.vmem [#allocation5], %s310
          %313 = vsyncadd %s308, 0
          %s314 = smul.addr %s32, 8
          %s315 = scalar_lea.hbm %s0, %s314
          %s317 = sshll.u32 %s315, 4
          %s318 = int_to_ptr.hbm [resolvable:$true] %s317
          %s319 = sshll.u32 %s311, 4
          %s320 = int_to_ptr.vmem [resolvable:$true] %s319
          %322 = dma.hbm_to_vmem [thread:$0]  %s318, 128, %s320, %s308
        $region44: #{tpu_custom_call.1} parent=39 // pred_fallthru
          _
      $region40: #{tpu_custom_call.1} parent=5 // pred_fallthru
        _
      %p323 = scmp.le.s32.totalorder 1, %s25
      %p324 = scmp.lt.s32.totalorder %s25, 3
      %p325 = pnand %p323, %p324
      %p326 = pneg %p325
      // Predicated region
      $region45: #{tpu_custom_call.1} parent=5 // pred_check
        _
      $region46: #{tpu_custom_call.1} parent=5 // pred_check_branch
        %328 = sbr.rel (%p325) target = $region48
      $region47: #{tpu_custom_call.1} parent=5 // pred_region
        %s329 = ssub.s32 %s25, 1
        %s330 = sand.u32 %s50, 1
        %s331 = scalar_lea.sflag [#allocation6], %s330
        %s332 = sand.u32 %s50, 1
        %s333 = smul.addr %s332, 8
        %s334 = scalar_lea.vmem [#allocation5], %s333
        // Predicated region
        $region49: #{tpu_custom_call.1} parent=47 // pred_check
          %p335 = pneg %p63
        $region50: #{tpu_custom_call.1} parent=47 // pred_check_branch
          %337 = sbr.rel (%p335) target = $region52
        $region51: #{tpu_custom_call.1} parent=47 // pred_region
          %339 = dma.done %s331, 128
        $region52: #{tpu_custom_call.1} parent=47 // pred_fallthru
          _
        // Predicated region
        $region53: #{tpu_custom_call.1} parent=47 // pred_check
          %p340 = pneg %p84
        $region54: #{tpu_custom_call.1} parent=47 // pred_check_branch
          %342 = sbr.rel (%p340) target = $region56
        $region55: #{tpu_custom_call.1} parent=47 // pred_region
          %344 = dma.done [#allocation9], 512
        $region56: #{tpu_custom_call.1} parent=47 // pred_fallthru
          _
        // Predicated region
        $region57: #{tpu_custom_call.1} parent=47 // pred_check
          %p345 = pneg %p126
        $region58: #{tpu_custom_call.1} parent=47 // pred_check_branch
          %347 = sbr.rel (%p345) target = $region60
        $region59: #{tpu_custom_call.1} parent=47 // pred_region
          %349 = dma.done [#allocation9], 512
        $region60: #{tpu_custom_call.1} parent=47 // pred_fallthru
          _
        %s350 = sand.u32 %s50, 1
        %s351 = scalar_lea.sflag [#allocation6], %s350
        %s352 = sand.u32 %s50, 1
        %s353 = smul.addr %s352, 8
        %s354 = scalar_lea.vmem [#allocation5], %s353
        %p355 = pneg %p63
        %p356 = pneg %p60
        %p357 = pneg %p84
        %p358 = pneg %p81
        %p359 = pneg %p105
        %p360 = pneg %p102
        %p361 = pneg %p126
        %p362 = pneg %p123
        %p363 = pneg %p147
        %p364 = pneg %p144
        %p365 = pneg %p168
        %p366 = pneg %p165
        %p367 = pneg %p189
        %p368 = pneg %p186
        %p369 = pneg %p217
        %p370 = pneg %p214
        %s371 = sand.u32 %s204, 1
        %s372 = scalar_lea.sflag [#allocation7], %s371
        %s373 = sand.u32 %s204, 1
        %s374 = smul.addr %s373, 8
        %s375 = scalar_lea.vmem [#allocation11], %s374
        %p376 = pneg %p245
        %p377 = pneg %p242
        %s378 = sand.u32 %s232, 1
        %s379 = scalar_lea.sflag [#allocation13], %s378
        %s380 = sand.u32 %s232, 1
        %s381 = smul.addr %s380, 32
        %s382 = scalar_lea.vmem [#allocation12], %s381
        %p383 = scmp.eq.s32.totalorder %s35, 0
        // Predicated region
        $region61: #{tpu_custom_call.1} parent=47 // pred_check
          %p384 = pneg %p383
        $region62: #{tpu_custom_call.1} parent=47 // pred_check_branch
          %386 = sbr.rel (%p384) target = $region64
        $region63: #{tpu_custom_call.1} parent=47 // pred_region
          %v387 = vld [vmem:[%s334] sm:$0xff]
          %v388 = vld [vmem:[#allocation8] sm:$0xff]
          %v389 = vld [vmem:[#allocation8 + $0x8] sm:$0xff]
          %v390 = vld [vmem:[#allocation8 + $0x10] sm:$0xff]
          %v391 = vld [vmem:[#allocation8 + $0x18] sm:$0xff]
          %v392 = vld [vmem:[%s2] sm:$0x1]
          %v394 = vperm.slane %v392, 0
          %vm396 = vcmask 261120
          %v398 = vsel %vm396, %v387, 0
          %400 = vmatpush.msra.mxu0 0.0
          %401 = vmatpush.msra.mxu0 0.0
          %402 = vmatpush.msra.mxu0 0.0
          %403 = vmatpush.msra.mxu0 0.0
          %404 = vmatpush.msra.mxu0 0.0
          %405 = vmatpush.msra.mxu0 0.0
          %406 = vmatpush.msra.mxu0 0.0
          %407 = vmatpush.msra.mxu0 0.0
          %408 = vmatpush.msra.mxu0 0.0
          %409 = vmatpush.msra.mxu0 0.0
          %410 = vmatpush.msra.mxu0 0.0
          %411 = vmatpush.msra.mxu0 0.0
          %412 = vmatpush.msra.mxu0 %v391
          %413 = vmatpush.msra.mxu0 %v390
          %414 = vmatpush.msra.mxu0 %v389
          %415 = vmatpush.msra.mxu0 %v388
          %416 = vmatmul.f32.gmra.mxu0 %v398
          %v417 = vpop.f32.mrf.mxu0
          %v418 = vadd.f32 %v394, %v417
          %419 = vdwg.mxu0
          %421 = vrot.lane.b32.xlu0 %v418, 120
          %v422 = vpop.permute.xlu0 %421
          %424 = vrot.lane.b32.xlu0 %v418, 112
          %v425 = vpop.permute.xlu0 %424
          %427 = vrot.lane.b32.xlu0 %v418, 104
          %v428 = vpop.permute.xlu0 %427
          %v430 = vrot.slane %v425, 4
          %vm431 = vcmask 1047556
          %v432 = vsel %vm431, %v430, %v418
          %v433 = vrot.slane %v418, 4
          %v434 = vsel %vm431, %v425, %v433
          %v436 = vunpack.c.l.s4 1983009808
          %v437 = vunpack.c.0.s8 %v436
          %v438 = vperm.slane %v432, %v437
          %v440 = vunpack.c.l.s4 1983009808
          %v441 = vunpack.c.0.s8 %v440
          %v442 = vperm.slane %v434, %v441
          %v443 = vrot.slane %v428, 4
          %v444 = vsel %vm431, %v443, %v422
          %v445 = vrot.slane %v422, 4
          %v446 = vsel %vm431, %v428, %v445
          %v448 = vunpack.c.l.s4 1983009808
          %v449 = vunpack.c.0.s8 %v448
          %v450 = vperm.slane %v444, %v449
          %v452 = vunpack.c.l.s4 1983009808
          %v453 = vunpack.c.0.s8 %v452
          %v454 = vperm.slane %v446, %v453
          %v455 = vrot.slane %v450, 4
          %v456 = vsel %vm431, %v455, %v438
          %v457 = vrot.slane %v438, 4
          %v458 = vsel %vm431, %v450, %v457
          %v460 = vunpack.c.l.s4 1934713408
          %v461 = vunpack.c.0.s8 %v460
          %v462 = vperm.slane %v456, %v461
          %v464 = vunpack.c.l.s4 1934713408
          %v465 = vunpack.c.0.s8 %v464
          %v466 = vperm.slane %v458, %v465
          %v467 = vrot.slane %v454, 4
          %v468 = vsel %vm431, %v467, %v442
          %v469 = vrot.slane %v442, 4
          %v470 = vsel %vm431, %v454, %v469
          %v472 = vunpack.c.l.s4 1934713408
          %v473 = vunpack.c.0.s8 %v472
          %v474 = vperm.slane %v468, %v473
          %v476 = vunpack.c.l.s4 1934713408
          %v477 = vunpack.c.0.s8 %v476
          %v478 = vperm.slane %v470, %v477
          %v479 = vrot.slane %v462, 4
          %v480 = vsel %vm431, 0.0, %v479
          %v481 = vrot.slane %v466, 4
          %v482 = vsel %vm431, 0.0, %v481
          %v483 = vrot.slane %v474, 4
          %v484 = vsel %vm431, 0.0, %v483
          %v485 = vrot.slane %v478, 4
          %v486 = vsel %vm431, 0.0, %v485
          %v487 = vsel %vm431, %v481, %v462
          %v489 = vunpack.c.l.s4 1983009808
          %v490 = vunpack.c.0.s8 %v489
          %v491 = vperm.slane %v487, %v490
          %v492 = vrot.slane %v482, 4
          %v493 = vsel %vm431, %v492, %v480
          %v495 = vunpack.c.l.s4 1983009808
          %v496 = vunpack.c.0.s8 %v495
          %v497 = vperm.slane %v493, %v496
          %v498 = vsel %vm431, %v485, %v474
          %v500 = vunpack.c.l.s4 1983009808
          %v501 = vunpack.c.0.s8 %v500
          %v502 = vperm.slane %v498, %v501
          %v503 = vrot.slane %v486, 4
          %v504 = vsel %vm431, %v503, %v484
          %v506 = vunpack.c.l.s4 1983009808
          %v507 = vunpack.c.0.s8 %v506
          %v508 = vperm.slane %v504, %v507
          %v509 = vrot.slane %v497, 4
          %v510 = vsel %vm431, %v509, %v491
          %v511 = vrot.slane %v491, 4
          %v512 = vsel %vm431, %v497, %v511
          %v514 = vunpack.c.l.s4 1934713408
          %v515 = vunpack.c.0.s8 %v514
          %v516 = vperm.slane %v510, %v515
          %v518 = vunpack.c.l.s4 1934713408
          %v519 = vunpack.c.0.s8 %v518
          %v520 = vperm.slane %v512, %v519
          %v521 = vrot.slane %v508, 4
          %v522 = vsel %vm431, %v521, %v502
          %v523 = vrot.slane %v502, 4
          %v524 = vsel %vm431, %v508, %v523
          %v526 = vunpack.c.l.s4 1934713408
          %v527 = vunpack.c.0.s8 %v526
          %v528 = vperm.slane %v522, %v527
          %v530 = vunpack.c.l.s4 1934713408
          %v531 = vunpack.c.0.s8 %v530
          %v532 = vperm.slane %v524, %v531
          %v533 = vrot.slane %v528, 4
          %v534 = vsel %vm431, %v533, %v516
          %v535 = vrot.slane %v516, 4
          %v536 = vsel %vm431, %v528, %v535
          %v537 = vrot.slane %v532, 4
          %v538 = vsel %vm431, %v537, %v520
          %v539 = vrot.slane %v520, 4
          %v540 = vsel %vm431, %v532, %v539
          %vm541 = vcmask 64512
          %542 = vst.msk [vmem:[#allocation2] sm:$0xff] %vm541, %v534
          %543 = vst.msk [vmem:[#allocation2 + $0x8] sm:$0xff] %vm541, %v536
          %544 = vst.msk [vmem:[#allocation2 + $0x10] sm:$0xff] %vm541, %v538
          %545 = vst.msk [vmem:[#allocation2 + $0x18] sm:$0xff] %vm541, %v540
          %546 = vrot.lane.b32.xlu0 %v418, 96
          %v547 = vpop.permute.xlu0 %546
          %548 = vrot.lane.b32.xlu0 %v422, 96
          %v549 = vpop.permute.xlu0 %548
          %550 = vrot.lane.b32.xlu0 %v425, 96
          %v551 = vpop.permute.xlu0 %550
          %552 = vrot.lane.b32.xlu0 %v428, 96
          %v553 = vpop.permute.xlu0 %552
          %v558 = vrot.slane %v551, 4
          %v559 = vsel %vm431, %v558, %v547
          %v560 = vrot.slane %v547, 4
          %v561 = vsel %vm431, %v551, %v560
          %v563 = vunpack.c.l.s4 1983009808
          %v564 = vunpack.c.0.s8 %v563
          %v565 = vperm.slane %v559, %v564
          %v567 = vunpack.c.l.s4 1983009808
          %v568 = vunpack.c.0.s8 %v567
          %v569 = vperm.slane %v561, %v568
          %v570 = vrot.slane %v553, 4
          %v571 = vsel %vm431, %v570, %v549
          %v572 = vrot.slane %v549, 4
          %v573 = vsel %vm431, %v553, %v572
          %v575 = vunpack.c.l.s4 1983009808
          %v576 = vunpack.c.0.s8 %v575
          %v577 = vperm.slane %v571, %v576
          %v579 = vunpack.c.l.s4 1983009808
          %v580 = vunpack.c.0.s8 %v579
          %v581 = vperm.slane %v573, %v580
          %v582 = vrot.slane %v577, 4
          %v583 = vsel %vm431, %v582, %v565
          %v584 = vrot.slane %v565, 4
          %v585 = vsel %vm431, %v577, %v584
          %v587 = vunpack.c.l.s4 1934713408
          %v588 = vunpack.c.0.s8 %v587
          %v589 = vperm.slane %v583, %v588
          %v591 = vunpack.c.l.s4 1934713408
          %v592 = vunpack.c.0.s8 %v591
          %v593 = vperm.slane %v585, %v592
          %v594 = vrot.slane %v581, 4
          %v595 = vsel %vm431, %v594, %v569
          %v596 = vrot.slane %v569, 4
          %v597 = vsel %vm431, %v581, %v596
          %v599 = vunpack.c.l.s4 1934713408
          %v600 = vunpack.c.0.s8 %v599
          %v601 = vperm.slane %v595, %v600
          %v603 = vunpack.c.l.s4 1934713408
          %v604 = vunpack.c.0.s8 %v603
          %v605 = vperm.slane %v597, %v604
          %v606 = vrot.slane %v589, 4
          %v607 = vsel %vm431, 0.0, %v606
          %v608 = vrot.slane %v593, 4
          %v609 = vsel %vm431, 0.0, %v608
          %v610 = vrot.slane %v601, 4
          %v611 = vsel %vm431, 0.0, %v610
          %v612 = vrot.slane %v605, 4
          %v613 = vsel %vm431, 0.0, %v612
          %v614 = vsel %vm431, %v608, %v589
          %v616 = vunpack.c.l.s4 1983009808
          %v617 = vunpack.c.0.s8 %v616
          %v618 = vperm.slane %v614, %v617
          %v619 = vrot.slane %v609, 4
          %v620 = vsel %vm431, %v619, %v607
          %v622 = vunpack.c.l.s4 1983009808
          %v623 = vunpack.c.0.s8 %v622
          %v624 = vperm.slane %v620, %v623
          %v625 = vsel %vm431, %v612, %v601
          %v627 = vunpack.c.l.s4 1983009808
          %v628 = vunpack.c.0.s8 %v627
          %v629 = vperm.slane %v625, %v628
          %v630 = vrot.slane %v613, 4
          %v631 = vsel %vm431, %v630, %v611
          %v633 = vunpack.c.l.s4 1983009808
          %v634 = vunpack.c.0.s8 %v633
          %v635 = vperm.slane %v631, %v634
          %v636 = vrot.slane %v624, 4
          %v637 = vsel %vm431, %v636, %v618
          %v638 = vrot.slane %v618, 4
          %v639 = vsel %vm431, %v624, %v638
          %v641 = vunpack.c.l.s4 1934713408
          %v642 = vunpack.c.0.s8 %v641
          %v643 = vperm.slane %v637, %v642
          %v645 = vunpack.c.l.s4 1934713408
          %v646 = vunpack.c.0.s8 %v645
          %v647 = vperm.slane %v639, %v646
          %v648 = vrot.slane %v635, 4
          %v649 = vsel %vm431, %v648, %v629
          %v650 = vrot.slane %v629, 4
          %v651 = vsel %vm431, %v635, %v650
          %v653 = vunpack.c.l.s4 1934713408
          %v654 = vunpack.c.0.s8 %v653
          %v655 = vperm.slane %v649, %v654
          %v657 = vunpack.c.l.s4 1934713408
          %v658 = vunpack.c.0.s8 %v657
          %v659 = vperm.slane %v651, %v658
          %v660 = vrot.slane %v655, 4
          %v661 = vsel %vm431, %v660, %v643
          %v662 = vrot.slane %v643, 4
          %v663 = vsel %vm431, %v655, %v662
          %v664 = vrot.slane %v659, 4
          %v665 = vsel %vm431, %v664, %v647
          %v666 = vrot.slane %v647, 4
          %v667 = vsel %vm431, %v659, %v666
          %668 = vst.msk [vmem:[#allocation3] sm:$0xff] %vm541, %v661
          %669 = vst.msk [vmem:[#allocation3 + $0x8] sm:$0xff] %vm541, %v663
          %670 = vst.msk [vmem:[#allocation3 + $0x10] sm:$0xff] %vm541, %v665
          %671 = vst.msk [vmem:[#allocation3 + $0x18] sm:$0xff] %vm541, %v667
          %672 = vrot.lane.b32.xlu0 %v418, 64
          %v673 = vpop.permute.xlu0 %672
          %674 = vrot.lane.b32.xlu0 %v422, 64
          %v675 = vpop.permute.xlu0 %674
          %676 = vrot.lane.b32.xlu0 %v425, 64
          %v677 = vpop.permute.xlu0 %676
          %678 = vrot.lane.b32.xlu0 %v428, 64
          %v679 = vpop.permute.xlu0 %678
          %v684 = vrot.slane %v677, 4
          %v685 = vsel %vm431, %v684, %v673
          %v686 = vrot.slane %v673, 4
          %v687 = vsel %vm431, %v677, %v686
          %v689 = vunpack.c.l.s4 1983009808
          %v690 = vunpack.c.0.s8 %v689
          %v691 = vperm.slane %v685, %v690
          %v693 = vunpack.c.l.s4 1983009808
          %v694 = vunpack.c.0.s8 %v693
          %v695 = vperm.slane %v687, %v694
          %v696 = vrot.slane %v679, 4
          %v697 = vsel %vm431, %v696, %v675
          %v698 = vrot.slane %v675, 4
          %v699 = vsel %vm431, %v679, %v698
          %v701 = vunpack.c.l.s4 1983009808
          %v702 = vunpack.c.0.s8 %v701
          %v703 = vperm.slane %v697, %v702
          %v705 = vunpack.c.l.s4 1983009808
          %v706 = vunpack.c.0.s8 %v705
          %v707 = vperm.slane %v699, %v706
          %v708 = vrot.slane %v703, 4
          %v709 = vsel %vm431, %v708, %v691
          %v710 = vrot.slane %v691, 4
          %v711 = vsel %vm431, %v703, %v710
          %v713 = vunpack.c.l.s4 1934713408
          %v714 = vunpack.c.0.s8 %v713
          %v715 = vperm.slane %v709, %v714
          %v717 = vunpack.c.l.s4 1934713408
          %v718 = vunpack.c.0.s8 %v717
          %v719 = vperm.slane %v711, %v718
          %v720 = vrot.slane %v707, 4
          %v721 = vsel %vm431, %v720, %v695
          %v722 = vrot.slane %v695, 4
          %v723 = vsel %vm431, %v707, %v722
          %v725 = vunpack.c.l.s4 1934713408
          %v726 = vunpack.c.0.s8 %v725
          %v727 = vperm.slane %v721, %v726
          %v729 = vunpack.c.l.s4 1934713408
          %v730 = vunpack.c.0.s8 %v729
          %v731 = vperm.slane %v723, %v730
          %v732 = vrot.slane %v715, 4
          %v733 = vsel %vm431, 0.0, %v732
          %v734 = vrot.slane %v719, 4
          %v735 = vsel %vm431, 0.0, %v734
          %v736 = vrot.slane %v727, 4
          %v737 = vsel %vm431, 0.0, %v736
          %v738 = vrot.slane %v731, 4
          %v739 = vsel %vm431, 0.0, %v738
          %v740 = vsel %vm431, %v734, %v715
          %v742 = vunpack.c.l.s4 1983009808
          %v743 = vunpack.c.0.s8 %v742
          %v744 = vperm.slane %v740, %v743
          %v745 = vrot.slane %v735, 4
          %v746 = vsel %vm431, %v745, %v733
          %v748 = vunpack.c.l.s4 1983009808
          %v749 = vunpack.c.0.s8 %v748
          %v750 = vperm.slane %v746, %v749
          %v751 = vsel %vm431, %v738, %v727
          %v753 = vunpack.c.l.s4 1983009808
          %v754 = vunpack.c.0.s8 %v753
          %v755 = vperm.slane %v751, %v754
          %v756 = vrot.slane %v739, 4
          %v757 = vsel %vm431, %v756, %v737
          %v759 = vunpack.c.l.s4 1983009808
          %v760 = vunpack.c.0.s8 %v759
          %v761 = vperm.slane %v757, %v760
          %v762 = vrot.slane %v750, 4
          %v763 = vsel %vm431, %v762, %v744
          %v764 = vrot.slane %v744, 4
          %v765 = vsel %vm431, %v750, %v764
          %v767 = vunpack.c.l.s4 1934713408
          %v768 = vunpack.c.0.s8 %v767
          %v769 = vperm.slane %v763, %v768
          %v771 = vunpack.c.l.s4 1934713408
          %v772 = vunpack.c.0.s8 %v771
          %v773 = vperm.slane %v765, %v772
          %v774 = vrot.slane %v761, 4
          %v775 = vsel %vm431, %v774, %v755
          %v776 = vrot.slane %v755, 4
          %v777 = vsel %vm431, %v761, %v776
          %v779 = vunpack.c.l.s4 1934713408
          %v780 = vunpack.c.0.s8 %v779
          %v781 = vperm.slane %v775, %v780
          %v783 = vunpack.c.l.s4 1934713408
          %v784 = vunpack.c.0.s8 %v783
          %v785 = vperm.slane %v777, %v784
          %v786 = vrot.slane %v781, 4
          %v787 = vsel %vm431, %v786, %v769
          %v788 = vrot.slane %v769, 4
          %v789 = vsel %vm431, %v781, %v788
          %v790 = vrot.slane %v785, 4
          %v791 = vsel %vm431, %v790, %v773
          %v792 = vrot.slane %v773, 4
          %v793 = vsel %vm431, %v785, %v792
          %794 = vst.msk [vmem:[#allocation4] sm:$0xff] %vm541, %v787
          %795 = vst.msk [vmem:[#allocation4 + $0x8] sm:$0xff] %vm541, %v789
          %796 = vst.msk [vmem:[#allocation4 + $0x10] sm:$0xff] %vm541, %v791
          %797 = vst.msk [vmem:[#allocation4 + $0x18] sm:$0xff] %vm541, %v793
        $region64: #{tpu_custom_call.1} parent=47 // pred_fallthru
          _
        %s798 = smul.u32 %s35, 8
        %s799 = scalar_lea.vmem [#allocation2], %s798
        %v800 = vld [vmem:[%s799] sm:$0xff]
        %v801 = vld [vmem:[%s799 + $0x8] sm:$0xff]
        %v802 = vld [vmem:[%s799 + $0x10] sm:$0xff]
        %v803 = vld [vmem:[%s799 + $0x18] sm:$0xff]
        %v804 = vld [vmem:[#allocation3] sm:$0xff]
        %v805 = vld [vmem:[#allocation3 + $0x8] sm:$0xff]
        %v806 = vld [vmem:[#allocation3 + $0x10] sm:$0xff]
        %v807 = vld [vmem:[#allocation3 + $0x18] sm:$0xff]
        %vm808 = vcmask 64512
        %v810 = vsel %vm808, %v800, 0
        %v813 = vsel %vm808, %v804, 0
        %815 = vmatpush.xpose.msra.mxu0 0.0
        %816 = vmatpush.xpose.msra.mxu0 0.0
        %817 = vmatpush.xpose.msra.mxu0 0.0
        %818 = vmatpush.xpose.msra.mxu0 0.0
        %819 = vmatpush.xpose.msra.mxu0 0.0
        %820 = vmatpush.xpose.msra.mxu0 0.0
        %821 = vmatpush.xpose.msra.mxu0 0.0
        %822 = vmatpush.xpose.msra.mxu0 0.0
        %823 = vmatpush.xpose.msra.mxu0 0.0
        %824 = vmatpush.xpose.msra.mxu0 0.0
        %825 = vmatpush.xpose.msra.mxu0 0.0
        %826 = vmatpush.xpose.msra.mxu0 0.0
        %827 = vmatpush.xpose.msra.mxu0 0.0
        %828 = vmatpush.xpose.msra.mxu0 0.0
        %829 = vmatpush.xpose.msra.mxu0 0.0
        %830 = vmatpush.xpose.msra.mxu0 %v813
        %831 = vmatmul.f32.gmra.mxu0 %v810
        %v832 = vpop.f32.mrf.mxu0
        %v833 = vadd.f32 0.0, %v832
        %834 = vdwg.mxu0
        %v836 = vsel %vm808, %v801, 0
        %v839 = vsel %vm808, %v805, 0
        %841 = vmatpush.xpose.msra.mxu0 0.0
        %842 = vmatpush.xpose.msra.mxu0 0.0
        %843 = vmatpush.xpose.msra.mxu0 0.0
        %844 = vmatpush.xpose.msra.mxu0 0.0
        %845 = vmatpush.xpose.msra.mxu0 0.0
        %846 = vmatpush.xpose.msra.mxu0 0.0
        %847 = vmatpush.xpose.msra.mxu0 0.0
        %848 = vmatpush.xpose.msra.mxu0 0.0
        %849 = vmatpush.xpose.msra.mxu0 0.0
        %850 = vmatpush.xpose.msra.mxu0 0.0
        %851 = vmatpush.xpose.msra.mxu0 0.0
        %852 = vmatpush.xpose.msra.mxu0 0.0
        %853 = vmatpush.xpose.msra.mxu0 0.0
        %854 = vmatpush.xpose.msra.mxu0 0.0
        %855 = vmatpush.xpose.msra.mxu0 0.0
        %856 = vmatpush.xpose.msra.mxu0 %v839
        %857 = vmatmul.f32.gmra.mxu0 %v836
        %v858 = vpop.f32.mrf.mxu0
        %v859 = vadd.f32 0.0, %v858
        %860 = vdwg.mxu0
        %v862 = vsel %vm808, %v802, 0
        %v865 = vsel %vm808, %v806, 0
        %867 = vmatpush.xpose.msra.mxu0 0.0
        %868 = vmatpush.xpose.msra.mxu0 0.0
        %869 = vmatpush.xpose.msra.mxu0 0.0
        %870 = vmatpush.xpose.msra.mxu0 0.0
        %871 = vmatpush.xpose.msra.mxu0 0.0
        %872 = vmatpush.xpose.msra.mxu0 0.0
        %873 = vmatpush.xpose.msra.mxu0 0.0
        %874 = vmatpush.xpose.msra.mxu0 0.0
        %875 = vmatpush.xpose.msra.mxu0 0.0
        %876 = vmatpush.xpose.msra.mxu0 0.0
        %877 = vmatpush.xpose.msra.mxu0 0.0
        %878 = vmatpush.xpose.msra.mxu0 0.0
        %879 = vmatpush.xpose.msra.mxu0 0.0
        %880 = vmatpush.xpose.msra.mxu0 0.0
        %881 = vmatpush.xpose.msra.mxu0 0.0
        %882 = vmatpush.xpose.msra.mxu0 %v865
        %883 = vmatmul.f32.gmra.mxu0 %v862
        %v884 = vpop.f32.mrf.mxu0
        %v885 = vadd.f32 0.0, %v884
        %886 = vdwg.mxu0
        %v888 = vsel %vm808, %v803, 0
        %v891 = vsel %vm808, %v807, 0
        %893 = vmatpush.xpose.msra.mxu0 0.0
        %894 = vmatpush.xpose.msra.mxu0 0.0
        %895 = vmatpush.xpose.msra.mxu0 0.0
        %896 = vmatpush.xpose.msra.mxu0 0.0
        %897 = vmatpush.xpose.msra.mxu0 0.0
        %898 = vmatpush.xpose.msra.mxu0 0.0
        %899 = vmatpush.xpose.msra.mxu0 0.0
        %900 = vmatpush.xpose.msra.mxu0 0.0
        %901 = vmatpush.xpose.msra.mxu0 0.0
        %902 = vmatpush.xpose.msra.mxu0 0.0
        %903 = vmatpush.xpose.msra.mxu0 0.0
        %904 = vmatpush.xpose.msra.mxu0 0.0
        %905 = vmatpush.xpose.msra.mxu0 0.0
        %906 = vmatpush.xpose.msra.mxu0 0.0
        %907 = vmatpush.xpose.msra.mxu0 0.0
        %908 = vmatpush.xpose.msra.mxu0 %v891
        %909 = vmatmul.f32.gmra.mxu0 %v888
        %v910 = vpop.f32.mrf.mxu0
        %v911 = vadd.f32 0.0, %v910
        %912 = vdwg.mxu0
        %v913 = vsel %vm808, %v833, -inf
        %914 = vmax.xlane.f32.xlu0 %v913
        %v915 = vpop.xlane.xlu0 %914
        %v916 = vsel %vm808, %v859, -inf
        %917 = vmax.xlane.f32.xlu0 %v916
        %v918 = vpop.xlane.xlu0 %917
        %v919 = vsel %vm808, %v885, -inf
        %920 = vmax.xlane.f32.xlu0 %v919
        %v921 = vpop.xlane.xlu0 %920
        %v922 = vsel %vm808, %v911, -inf
        %923 = vmax.xlane.f32.xlu0 %v922
        %v924 = vpop.xlane.xlu0 %923
        %v925 = vsub.f32 %v833, %v915
        %v926 = vsub.f32 %v859, %v918
        %v927 = vsub.f32 %v885, %v921
        %v928 = vsub.f32 %v911, %v924
        %v929 = vmul.f32 %v925, 1.442695
        %v930 = vpow.pop %v929
        %v931 = vmul.f32 %v926, 1.442695
        %v932 = vpow.pop %v931
        %v933 = vmul.f32 %v927, 1.442695
        %v934 = vpow.pop %v933
        %v935 = vmul.f32 %v928, 1.442695
        %v936 = vpow.pop %v935
        %v937 = vsel %vm808, %v930, 0.0
        %938 = vadd.xlane.f32.xlu0 %v937
        %v939 = vpop.xlane.xlu0 %938
        %v940 = vsel %vm808, %v932, 0.0
        %941 = vadd.xlane.f32.xlu0 %v940
        %v942 = vpop.xlane.xlu0 %941
        %v943 = vsel %vm808, %v934, 0.0
        %944 = vadd.xlane.f32.xlu0 %v943
        %v945 = vpop.xlane.xlu0 %944
        %v946 = vsel %vm808, %v936, 0.0
        %947 = vadd.xlane.f32.xlu0 %v946
        %v948 = vpop.xlane.xlu0 %947
        %v949 = vrcp.pop %v939
        %v950 = vrcp.pop %v942
        %v951 = vrcp.pop %v945
        %v952 = vrcp.pop %v948
        %v953 = vmul.f32 %v930, %v949
        %v954 = vmul.f32 %v932, %v950
        %v955 = vmul.f32 %v934, %v951
        %v956 = vmul.f32 %v936, %v952
        %957 = vst.msk [vmem:[%s382] sm:$0xff] %vm808, %v953
        %958 = vst.msk [vmem:[%s382 + $0x8] sm:$0xff] %vm808, %v954
        %959 = vst.msk [vmem:[%s382 + $0x10] sm:$0xff] %vm808, %v955
        %960 = vst.msk [vmem:[%s382 + $0x18] sm:$0xff] %vm808, %v956
        %v961 = vld [vmem:[#allocation4] sm:$0xff]
        %v962 = vld [vmem:[#allocation4 + $0x8] sm:$0xff]
        %v963 = vld [vmem:[#allocation4 + $0x10] sm:$0xff]
        %v964 = vld [vmem:[#allocation4 + $0x18] sm:$0xff]
        %v966 = vsel %vm808, %v953, 0
        %968 = vmatpush.msra.mxu0 0.0
        %969 = vmatpush.msra.mxu0 0.0
        %970 = vmatpush.msra.mxu0 0.0
        %971 = vmatpush.msra.mxu0 0.0
        %972 = vmatpush.msra.mxu0 0.0
        %973 = vmatpush.msra.mxu0 0.0
        %974 = vmatpush.msra.mxu0 0.0
        %975 = vmatpush.msra.mxu0 0.0
        %976 = vmatpush.msra.mxu0 0.0
        %977 = vmatpush.msra.mxu0 0.0
        %978 = vmatpush.msra.mxu0 0.0
        %979 = vmatpush.msra.mxu0 0.0
        %980 = vmatpush.msra.mxu0 0.0
        %981 = vmatpush.msra.mxu0 0.0
        %982 = vmatpush.msra.mxu0 0.0
        %983 = vmatpush.msra.mxu0 %v961
        %984 = vmatmul.f32.gmra.mxu0 %v966
        %v985 = vpop.f32.mrf.mxu0
        %v986 = vadd.f32 0.0, %v985
        %987 = vdwg.mxu0
        %v989 = vsel %vm808, %v954, 0
        %991 = vmatpush.msra.mxu0 0.0
        %992 = vmatpush.msra.mxu0 0.0
        %993 = vmatpush.msra.mxu0 0.0
        %994 = vmatpush.msra.mxu0 0.0
        %995 = vmatpush.msra.mxu0 0.0
        %996 = vmatpush.msra.mxu0 0.0
        %997 = vmatpush.msra.mxu0 0.0
        %998 = vmatpush.msra.mxu0 0.0
        %999 = vmatpush.msra.mxu0 0.0
        %1000 = vmatpush.msra.mxu0 0.0
        %1001 = vmatpush.msra.mxu0 0.0
        %1002 = vmatpush.msra.mxu0 0.0
        %1003 = vmatpush.msra.mxu0 0.0
        %1004 = vmatpush.msra.mxu0 0.0
        %1005 = vmatpush.msra.mxu0 0.0
        %1006 = vmatpush.msra.mxu0 %v962
        %1007 = vmatmul.f32.gmra.mxu0 %v989
        %v1008 = vpop.f32.mrf.mxu0
        %v1009 = vadd.f32 0.0, %v1008
        %1010 = vdwg.mxu0
        %v1012 = vsel %vm808, %v955, 0
        %1014 = vmatpush.msra.mxu0 0.0
        %1015 = vmatpush.msra.mxu0 0.0
        %1016 = vmatpush.msra.mxu0 0.0
        %1017 = vmatpush.msra.mxu0 0.0
        %1018 = vmatpush.msra.mxu0 0.0
        %1019 = vmatpush.msra.mxu0 0.0
        %1020 = vmatpush.msra.mxu0 0.0
        %1021 = vmatpush.msra.mxu0 0.0
        %1022 = vmatpush.msra.mxu0 0.0
        %1023 = vmatpush.msra.mxu0 0.0
        %1024 = vmatpush.msra.mxu0 0.0
        %1025 = vmatpush.msra.mxu0 0.0
        %1026 = vmatpush.msra.mxu0 0.0
        %1027 = vmatpush.msra.mxu0 0.0
        %1028 = vmatpush.msra.mxu0 0.0
        %1029 = vmatpush.msra.mxu0 %v963
        %1030 = vmatmul.f32.gmra.mxu0 %v1012
        %v1031 = vpop.f32.mrf.mxu0
        %v1032 = vadd.f32 0.0, %v1031
        %1033 = vdwg.mxu0
        %v1035 = vsel %vm808, %v956, 0
        %1037 = vmatpush.msra.mxu0 0.0
        %1038 = vmatpush.msra.mxu0 0.0
        %1039 = vmatpush.msra.mxu0 0.0
        %1040 = vmatpush.msra.mxu0 0.0
        %1041 = vmatpush.msra.mxu0 0.0
        %1042 = vmatpush.msra.mxu0 0.0
        %1043 = vmatpush.msra.mxu0 0.0
        %1044 = vmatpush.msra.mxu0 0.0
        %1045 = vmatpush.msra.mxu0 0.0
        %1046 = vmatpush.msra.mxu0 0.0
        %1047 = vmatpush.msra.mxu0 0.0
        %1048 = vmatpush.msra.mxu0 0.0
        %1049 = vmatpush.msra.mxu0 0.0
        %1050 = vmatpush.msra.mxu0 0.0
        %1051 = vmatpush.msra.mxu0 0.0
        %1052 = vmatpush.msra.mxu0 %v964
        %1053 = vmatmul.f32.gmra.mxu0 %v1035
        %v1054 = vpop.f32.mrf.mxu0
        %v1055 = vadd.f32 0.0, %v1054
        %1056 = vdwg.mxu0
        %v1057 = vrot.slane %v1032, 4
        %vm1058 = vcmask 1047556
        %v1059 = vsel %vm1058, %v1057, %v986
        %v1060 = vrot.slane %v986, 4
        %v1061 = vsel %vm1058, %v1032, %v1060
        %v1063 = vunpack.c.l.s4 1983009808
        %v1064 = vunpack.c.0.s8 %v1063
        %v1065 = vperm.slane %v1059, %v1064
        %v1067 = vunpack.c.l.s4 1983009808
        %v1068 = vunpack.c.0.s8 %v1067
        %v1069 = vperm.slane %v1061, %v1068
        %v1070 = vrot.slane %v1055, 4
        %v1071 = vsel %vm1058, %v1070, %v1009
        %v1072 = vrot.slane %v1009, 4
        %v1073 = vsel %vm1058, %v1055, %v1072
        %v1075 = vunpack.c.l.s4 1983009808
        %v1076 = vunpack.c.0.s8 %v1075
        %v1077 = vperm.slane %v1071, %v1076
        %v1079 = vunpack.c.l.s4 1983009808
        %v1080 = vunpack.c.0.s8 %v1079
        %v1081 = vperm.slane %v1073, %v1080
        %v1082 = vrot.slane %v1077, 4
        %v1083 = vsel %vm1058, %v1082, %v1065
        %v1084 = vrot.slane %v1065, 4
        %v1085 = vsel %vm1058, %v1077, %v1084
        %v1087 = vunpack.c.l.s4 1934713408
        %v1088 = vunpack.c.0.s8 %v1087
        %v1089 = vperm.slane %v1083, %v1088
        %v1091 = vunpack.c.l.s4 1934713408
        %v1092 = vunpack.c.0.s8 %v1091
        %v1093 = vperm.slane %v1085, %v1092
        %v1094 = vrot.slane %v1081, 4
        %v1095 = vsel %vm1058, %v1094, %v1069
        %v1096 = vrot.slane %v1069, 4
        %v1097 = vsel %vm1058, %v1081, %v1096
        %v1099 = vunpack.c.l.s4 1934713408
        %v1100 = vunpack.c.0.s8 %v1099
        %v1101 = vperm.slane %v1095, %v1100
        %v1103 = vunpack.c.l.s4 1934713408
        %v1104 = vunpack.c.0.s8 %v1103
        %v1105 = vperm.slane %v1097, %v1104
        %v1106 = vrot.slane %v1089, 4
        %v1107 = vsel %vm1058, 0.0, %v1106
        %v1108 = vrot.slane %v1093, 4
        %v1109 = vsel %vm1058, 0.0, %v1108
        %v1110 = vrot.slane %v1101, 4
        %v1111 = vsel %vm1058, 0.0, %v1110
        %v1112 = vrot.slane %v1105, 4
        %v1113 = vsel %vm1058, 0.0, %v1112
        %v1114 = vsel %vm1058, %v1108, %v1089
        %v1116 = vunpack.c.l.s4 1983009808
        %v1117 = vunpack.c.0.s8 %v1116
        %v1118 = vperm.slane %v1114, %v1117
        %v1119 = vrot.slane %v1109, 4
        %v1120 = vsel %vm1058, %v1119, %v1107
        %v1122 = vunpack.c.l.s4 1983009808
        %v1123 = vunpack.c.0.s8 %v1122
        %v1124 = vperm.slane %v1120, %v1123
        %v1125 = vsel %vm1058, %v1112, %v1101
        %v1127 = vunpack.c.l.s4 1983009808
        %v1128 = vunpack.c.0.s8 %v1127
        %v1129 = vperm.slane %v1125, %v1128
        %v1130 = vrot.slane %v1113, 4
        %v1131 = vsel %vm1058, %v1130, %v1111
        %v1133 = vunpack.c.l.s4 1983009808
        %v1134 = vunpack.c.0.s8 %v1133
        %v1135 = vperm.slane %v1131, %v1134
        %v1136 = vrot.slane %v1124, 4
        %v1137 = vsel %vm1058, %v1136, %v1118
        %v1138 = vrot.slane %v1118, 4
        %v1139 = vsel %vm1058, %v1124, %v1138
        %v1141 = vunpack.c.l.s4 1934713408
        %v1142 = vunpack.c.0.s8 %v1141
        %v1143 = vperm.slane %v1137, %v1142
        %v1145 = vunpack.c.l.s4 1934713408
        %v1146 = vunpack.c.0.s8 %v1145
        %v1147 = vperm.slane %v1139, %v1146
        %v1148 = vrot.slane %v1135, 4
        %v1149 = vsel %vm1058, %v1148, %v1129
        %v1150 = vrot.slane %v1129, 4
        %v1151 = vsel %vm1058, %v1135, %v1150
        %v1153 = vunpack.c.l.s4 1934713408
        %v1154 = vunpack.c.0.s8 %v1153
        %v1155 = vperm.slane %v1149, %v1154
        %v1157 = vunpack.c.l.s4 1934713408
        %v1158 = vunpack.c.0.s8 %v1157
        %v1159 = vperm.slane %v1151, %v1158
        %v1160 = vrot.slane %v1155, 4
        %v1161 = vsel %vm1058, %v1160, %v1143
        %v1162 = vrot.slane %v1143, 4
        %v1163 = vsel %vm1058, %v1155, %v1162
        %v1164 = vrot.slane %v1159, 4
        %v1165 = vsel %vm1058, %v1164, %v1147
        %v1166 = vrot.slane %v1147, 4
        %v1167 = vsel %vm1058, %v1159, %v1166
        %1169 = vrot.lane.b32.xlu0 %v1163, 8
        %v1170 = vpop.permute.xlu0 %1169
        %1173 = vrot.lane.b32.xlu0 %v1165, 16
        %v1174 = vpop.permute.xlu0 %1173
        %1177 = vrot.lane.b32.xlu0 %v1167, 24
        %v1178 = vpop.permute.xlu0 %1177
        %v1180 = vsel %vm808, %v1161, %v1170
        %vm1181 = vcmask 130048
        %v1182 = vsel %vm1181, %v1180, %v1174
        %vm1183 = vcmask 195584
        %v1184 = vsel %vm1183, %v1182, %v1178
        %v1185 = vld [vmem:[#allocation10] sm:$0xff]
        %v1186 = vld [vmem:[#allocation10 + $0x8] sm:$0xff]
        %v1187 = vld [vmem:[#allocation10 + $0x10] sm:$0xff]
        %v1188 = vld [vmem:[#allocation10 + $0x18] sm:$0xff]
        %v1189 = vld [vmem:[%s4] sm:$0x1]
        %v1191 = vperm.slane %v1189, 0
        %vm1193 = vcmask 261120
        %v1195 = vsel %vm1193, %v1184, 0
        %1197 = vmatpush.msra.mxu0 0.0
        %1198 = vmatpush.msra.mxu0 0.0
        %1199 = vmatpush.msra.mxu0 0.0
        %1200 = vmatpush.msra.mxu0 0.0
        %1201 = vmatpush.msra.mxu0 0.0
        %1202 = vmatpush.msra.mxu0 0.0
        %1203 = vmatpush.msra.mxu0 0.0
        %1204 = vmatpush.msra.mxu0 0.0
        %1205 = vmatpush.msra.mxu0 0.0
        %1206 = vmatpush.msra.mxu0 0.0
        %1207 = vmatpush.msra.mxu0 0.0
        %1208 = vmatpush.msra.mxu0 0.0
        %1209 = vmatpush.msra.mxu0 %v1188
        %1210 = vmatpush.msra.mxu0 %v1187
        %1211 = vmatpush.msra.mxu0 %v1186
        %1212 = vmatpush.msra.mxu0 %v1185
        %1213 = vmatmul.f32.gmra.mxu0 %v1195
        %v1214 = vpop.f32.mrf.mxu0
        %v1215 = vadd.f32 %v1191, %v1214
        %1216 = vdwg.mxu0
        %s1217 = scalar_lea.vmem %s334, %s798 [#allocation5]
        %v1218 = vld [vmem:[%s1217] sm:$0xff]
        %v1219 = vadd.f32 %v1215, %v1218
        %v1220 = vsel %vm1193, %v1219, 0.0
        %1221 = vadd.xlane.f32.xlu0 %v1220
        %v1222 = vpop.xlane.xlu0 %1221
        %v1223 = vrcp.pop 32.0
        %v1224 = vmul.f32 32.0, %v1223
        %v1225 = vsub.f32 1.0, %v1224
        %v1226 = vmul.f32 %v1223, %v1225
        %v1227 = vadd.f32 %v1223, %v1226
        %vm1228 = vweird.f32 %v1223
        %v1229 = vsel %vm1228, %v1223, %v1227
        %v1230 = vmul.f32 %v1222, %v1229
        %v1231 = vsub.f32 %v1219, %v1230
        %v1232 = vmul.f32 %v1231, %v1231
        %v1233 = vsel %vm1193, %v1232, 0.0
        %1234 = vadd.xlane.f32.xlu0 %v1233
        %v1235 = vpop.xlane.xlu0 %1234
        %v1236 = vmul.f32 %v1235, %v1229
        %v1237 = vadd.f32 %v1236, 1e-05
        %v1238 = vrsqrt.pop %v1237
        %v1239 = vmul.f32 %v1238, %v1237
        %v1240 = vmul.f32 %v1239, %v1238
        %v1241 = vmul.f32 0.5, %v1240
        %v1242 = vsub.f32 1.5, %v1241
        %v1243 = vmul.f32 %v1238, %v1242
        %vm1244 = vweird.f32 %v1237
        %vm1245 = vweird.f32 %v1238
        %vm1246 = vmor %vm1244, %vm1245
        %v1247 = vsel %vm1246, %v1238, %v1243
        %v1248 = vmul.f32 %v1231, %v1247
        %v1249 = vld [vmem:[%s5] sm:$0x1]
        %v1251 = vperm.slane %v1249, 0
        %v1253 = vmul.f32 %v1248, %v1251
        %v1254 = vld [vmem:[%s6] sm:$0x1]
        %v1256 = vperm.slane %v1254, 0
        %v1258 = vadd.f32 %v1253, %v1256
        %1259 = vst.msk [vmem:[%s375] sm:$0xff] %vm1193, %v1258
        %s1260 = sand.u32 %s204, 1
        %s1261 = scalar_lea.sflag [#allocation7], %s1260
        %s1262 = sand.u32 %s204, 1
        %s1263 = smul.addr %s1262, 8
        %s1264 = scalar_lea.vmem [#allocation11], %s1263
        %s1265 = sand.u32 %s232, 1
        %s1266 = scalar_lea.sflag [#allocation13], %s1265
        %s1267 = sand.u32 %s232, 1
        %s1268 = smul.addr %s1267, 32
        %s1269 = scalar_lea.vmem [#allocation12], %s1268
        // Predicated region
        $region65: #{tpu_custom_call.1} parent=47 // pred_check
          %p1270 = pneg %p214
        $region66: #{tpu_custom_call.1} parent=47 // pred_check_branch
          %1272 = sbr.rel (%p1270) target = $region68
        $region67: #{tpu_custom_call.1} parent=47 // pred_region
          %1274 = vsyncadd %s1261, 0
          %s1275 = sadd.s32 %s35, %s34
          %s1276 = smul.addr %s1275, 8
          %s1277 = scalar_lea.hbm %s7, %s1276
          %s1279 = sshll.u32 %s1264, 4
          %s1280 = int_to_ptr.vmem [resolvable:$true] %s1279
          %s1281 = sshll.u32 %s1277, 4
          %s1282 = int_to_ptr.hbm [resolvable:$true] %s1281
          %1284 = dma.vmem_to_hbm [thread:$0]  %s1280, 128, %s1282, %s1261
        $region68: #{tpu_custom_call.1} parent=47 // pred_fallthru
          _
        // Predicated region
        $region69: #{tpu_custom_call.1} parent=47 // pred_check
          %p1285 = pneg %p242
        $region70: #{tpu_custom_call.1} parent=47 // pred_check_branch
          %1287 = sbr.rel (%p1285) target = $region72
        $region71: #{tpu_custom_call.1} parent=47 // pred_region
          %1289 = vsyncadd %s1266, 0
          %s1290 = smul.addr %s34, 4
          %s1291 = sadd.s32 %s35, %s1290
          %s1292 = smul.addr %s1291, 8
          %s1293 = scalar_lea.hbm %s8, %s1292
          %s1294 = sshll.u32 %s1269, 4
          %s1295 = int_to_ptr.vmem [resolvable:$true] %s1294
          %s1296 = sshll.u32 %s1293, 4
          %s1297 = int_to_ptr.hbm [resolvable:$true] %s1296
          %1302 = dma.vmem_to_hbm [thread:$0]  %s1295, 512, %s1297, %s1266, 128, 128, 8
        $region72: #{tpu_custom_call.1} parent=47 // pred_fallthru
          _
      $region48: #{tpu_custom_call.1} parent=5 // pred_fallthru
        _
      %p1303 = scmp.le.s32.totalorder 2, %s25
      // Predicated region
      $region73: #{tpu_custom_call.1} parent=5 // pred_check
        %p1304 = pneg %p1303
      $region74: #{tpu_custom_call.1} parent=5 // pred_check_branch
        %1306 = sbr.rel (%p1304) target = $region76
      $region75: #{tpu_custom_call.1} parent=5 // pred_region
        %s1307 = ssub.s32 %s25, 2
        // Predicated region
        $region77: #{tpu_custom_call.1} parent=75 // pred_check
          %p1308 = pneg %p220
        $region78: #{tpu_custom_call.1} parent=75 // pred_check_branch
          %1310 = sbr.rel (%p1308) target = $region80
        $region79: #{tpu_custom_call.1} parent=75 // pred_region
          %s1311 = sand.u32 %s205, 1
          %s1312 = scalar_lea.sflag [#allocation7], %s1311
          %s1313 = sand.u32 %s205, 1
          %s1314 = smul.addr %s1313, 8
          %s1315 = scalar_lea.vmem [#allocation11], %s1314
          %1317 = dma.done %s1312, 128
        $region80: #{tpu_custom_call.1} parent=75 // pred_fallthru
          _
        // Predicated region
        $region81: #{tpu_custom_call.1} parent=75 // pred_check
          %p1318 = pneg %p248
        $region82: #{tpu_custom_call.1} parent=75 // pred_check_branch
          %1320 = sbr.rel (%p1318) target = $region84
        $region83: #{tpu_custom_call.1} parent=75 // pred_region
          %s1321 = sand.u32 %s233, 1
          %s1322 = scalar_lea.sflag [#allocation13], %s1321
          %s1323 = sand.u32 %s233, 1
          %s1324 = smul.addr %s1323, 32
          %s1325 = scalar_lea.vmem [#allocation12], %s1324
          %1327 = dma.done %s1322, 512
        $region84: #{tpu_custom_call.1} parent=75 // pred_fallthru
          _
      $region76: #{tpu_custom_call.1} parent=5 // pred_fallthru
        _
    $region6: #{tpu_custom_call.1} parent=1 // loop_footer
      %s29 = sadd.s32 1, %s25
    $region7: #{tpu_custom_call.1} parent=1 // loop_footer_branch
      %24 = sbr.rel target = $region3
    $region8: #{tpu_custom_call.1} parent=1 // loop_exit
      _
    %1328 = vsyncpa [#allocation6], 1
    %s1329 = scalar_lea.sflag [#allocation6], 1
    %1330 = vsyncpa %s1329, 1
    %1331 = vsyncpa [#allocation9], 1
    %1332 = vsyncpa [#allocation7], 1
    %s1333 = scalar_lea.sflag [#allocation7], 1
    %1334 = vsyncpa %s1333, 1
    %1335 = vsyncpa [#allocation13], 1
    %s1336 = scalar_lea.sflag [#allocation13], 1
    %1337 = vsyncpa %s1336, 1

// kernel: tpu_custom_call.1
$region0: #{tpu_custom_call.1}
  #allocation0 [shape = 'u32[]', space=smem, size = 0x4, offset = 0x4, fixed_abs, tag = 'smem constant byte address 0x4 - core index']
  #allocation1 [shape = 'u32[72,128]{1,0:T(1,128)}', space=vmem, size = 0x9000, scoped, tag = 'internal scratch']
  #allocation2 [shape = 'f32[4,8,8]{2,1,0:T(8,128)}', space=vmem, size = 0x4000, scoped, tag = 'scratch operand']
  #allocation3 [shape = 'f32[4,8,8]{2,1,0:T(8,128)}', space=vmem, size = 0x4000, scoped, tag = 'scratch operand']
  #allocation4 [shape = 'f32[4,8,8]{2,1,0:T(8,128)}', space=vmem, size = 0x4000, scoped, tag = 'scratch operand']
  %s0 = inlined_call_operand.hbm [shape: f32[2,8,32], index: 0, kind: input, shape index: {}]
  %s1 = inlined_call_operand.hbm [shape: f32[32,96], index: 1, kind: input, shape index: {}]
  %s2 = inlined_call_operand.vmem [shape: f32[1,96], index: 2, kind: input, shape index: {}]
  %s3 = inlined_call_operand.hbm [shape: f32[32,32], index: 3, kind: input, shape index: {}]
  %s4 = inlined_call_operand.vmem [shape: f32[1,32], index: 4, kind: input, shape index: {}]
  %s5 = inlined_call_operand.vmem [shape: f32[1,32], index: 5, kind: input, shape index: {}]
  %s6 = inlined_call_operand.vmem [shape: f32[1,32], index: 6, kind: input, shape index: {}]
  %s7 = inlined_call_operand.hbm [shape: f32[2,8,32], index: 7, kind: output, shape index: {0}]
  %s8 = inlined_call_operand.hbm [shape: f32[2,4,8,8], index: 8, kind: output, shape index: {1}]
  %9 = xla_tuple %s7, %s8
  %s10 = sld [smem:[#allocation0]]
  $region85: #{tpu_custom_call.1} parent=0
    _
  %s12 = ssub.s32 1, %s10
  %s13 = scalar_select 0, %s12, %s10
  $region1: #{tpu_custom_call.1} parent=0
    #allocation5 [shape = 'u8[8192]{0}', space=vmem, size = 0x2000, scoped, tag = 'input window, operand 0']
    #allocation6 [shape = 's32[2]{0}', space=sflag, size = 0x8, scoped, tag = 'scoped memory for tpu_custom_call.1']
    #allocation7 [shape = 's32[2]{0}', space=sflag, size = 0x8, scoped, tag = 'scoped memory for tpu_custom_call.1']
    #allocation8 [shape = 'u8[16384]{0}', space=vmem, size = 0x4000, scoped, tag = 'input window, operand 1, single buffered']
    #allocation9 [shape = 's32[1]{0}', space=sflag, size = 0x4, scoped, tag = 'scoped memory for tpu_custom_call.1']
    #allocation10 [shape = 'u8[16384]{0}', space=vmem, size = 0x4000, scoped, tag = 'input window, operand 3, single buffered']
    #allocation11 [shape = 'u8[8192]{0}', space=vmem, size = 0x2000, scoped, tag = 'output window, operand 0']
    #allocation12 [shape = 'u8[32768]{0}', space=vmem, size = 0x8000, scoped, tag = 'output window, operand 1']
    #allocation13 [shape = 's32[2]{0}', space=sflag, size = 0x8, scoped, tag = 'scoped memory for tpu_custom_call.1']
    %14 = vsyncpa [#allocation6], 0
    %s15 = scalar_lea.sflag [#allocation6], 1
    %16 = vsyncpa %s15, 0
    %17 = vsyncpa [#allocation9], 0
    %18 = vsyncpa [#allocation7], 0
    %s19 = scalar_lea.sflag [#allocation7], 1
    %20 = vsyncpa %s19, 0
    %21 = vsyncpa [#allocation13], 0
    %s22 = scalar_lea.sflag [#allocation13], 1
    %23 = vsyncpa %s22, 0
    loop: start=0, step=1, limit=4
    $region2: #{tpu_custom_call.1} parent=1 // loop_pre_header
      _
    $region3: #{tpu_custom_call.1} parent=1 // loop_header
      %s25 = sphi 0, %s29
      %p26 = scmp.ge.s32.totalorder %s25, 4
      %s32 = sphi 0, %s44
      %s33 = sphi 0, %s40
      %s34 = sphi 0, %s32
      %s35 = sphi 0, %s33
      %s36 = sphi 0, %s34
      %s37 = sphi 0, %s35
      %s47 = sphi 0, %s49
      %s50 = sphi 0, %s47
      %s51 = sphi 0, %s50
      %s67 = sphi 0, %s51
      %s71 = sphi 0, %s71
      %s73 = sphi 0, %s71
      %s74 = sphi 0, %s73
      %s88 = sphi 0, %s74
      %s92 = sphi 0, %s92
      %s94 = sphi 0, %s92
      %s95 = sphi 0, %s94
      %s109 = sphi 0, %s95
      %s113 = sphi 0, %s113
      %s115 = sphi 0, %s113
      %s116 = sphi 0, %s115
      %s130 = sphi 0, %s116
      %s134 = sphi 0, %s134
      %s136 = sphi 0, %s134
      %s137 = sphi 0, %s136
      %s151 = sphi 0, %s137
      %s155 = sphi 0, %s155
      %s157 = sphi 0, %s155
      %s158 = sphi 0, %s157
      %s172 = sphi 0, %s158
      %s176 = sphi 0, %s176
      %s178 = sphi 0, %s176
      %s179 = sphi 0, %s178
      %s193 = sphi 0, %s179
      %s201 = sphi 0, %s203
      %s204 = sphi 0, %s201
      %s205 = sphi 0, %s204
      %s221 = sphi 0, %s205
      %s229 = sphi 0, %s231
      %s232 = sphi 0, %s229
      %s233 = sphi 0, %s232
      %s249 = sphi 0, %s233
    $region4: #{tpu_custom_call.1} parent=1 // loop_header_branch
      %28 = sbr.rel (%p26) target = $region8
    $region5: #{tpu_custom_call.1} parent=1 // loop_body
      %s30 = ssub.s32 %s25, 1
      %s31 = ssub.s32 %s25, 2
      %s38 = sadd.s32 1, %s33
      %p39 = scmp.ge.s32.totalorder %s38, 1
      %s40 = scalar_select %p39, 0, %s38
      %s41 = sadd.s32 1, %s32
      %s42 = scalar_select %p39, %s41, %s32
      %p43 = scmp.ge.s32.totalorder %s42, 2
      %s44 = scalar_select %p43, 0, %s42
      %s45 = ssub.s32 %s32, %s44
      %p46 = scmp.eq.s32.totalorder %s45, 0
      %s48 = sadd.s32 %s47, 1
      %s49 = scalar_select %p46, %s47, %s48
      %p52 = pneg %p46
      %p53 = scmp.eq.s32.totalorder %s25, 1
      %p54 = por %p52, %p53
      %p55 = scmp.ne.s32.totalorder %s47, %s50
      %p56 = scmp.eq.s32.totalorder %s25, 0
      %p57 = por %p55, %p56
      %p58 = scmp.ne.s32.totalorder %s47, %s50
      %p59 = scmp.eq.s32.totalorder %s30, 1
      %p60 = por %p58, %p59
      %p61 = scmp.ne.s32.totalorder %s50, %s51
      %p62 = scmp.eq.s32.totalorder %s30, 0
      %p63 = por %p61, %p62
      %p64 = scmp.ne.s32.totalorder %s50, %s51
      %p65 = scmp.eq.s32.totalorder %s31, 1
      %p66 = por %p64, %p65
      %p68 = scmp.ne.s32.totalorder %s51, %s67
      %p69 = scmp.eq.s32.totalorder %s31, 0
      %p70 = por %p68, %p69
      %s72 = sadd.s32 %s71, 1
      %p75 = scmp.eq.s32.totalorder %s25, 1
      %p76 = scmp.ne.s32.totalorder %s71, %s73
      %p77 = scmp.eq.s32.totalorder %s25, 0
      %p78 = por %p76, %p77
      %p79 = scmp.ne.s32.totalorder %s71, %s73
      %p80 = scmp.eq.s32.totalorder %s30, 1
      %p81 = por %p79, %p80
      %p82 = scmp.ne.s32.totalorder %s73, %s74
      %p83 = scmp.eq.s32.totalorder %s30, 0
      %p84 = por %p82, %p83
      %p85 = scmp.ne.s32.totalorder %s73, %s74
      %p86 = scmp.eq.s32.totalorder %s31, 1
      %p87 = por %p85, %p86
      %p89 = scmp.ne.s32.totalorder %s74, %s88
      %p90 = scmp.eq.s32.totalorder %s31, 0
      %p91 = por %p89, %p90
      %s93 = sadd.s32 %s92, 1
      %p96 = scmp.eq.s32.totalorder %s25, 1
      %p97 = scmp.ne.s32.totalorder %s92, %s94
      %p98 = scmp.eq.s32.totalorder %s25, 0
      %p99 = por %p97, %p98
      %p100 = scmp.ne.s32.totalorder %s92, %s94
      %p101 = scmp.eq.s32.totalorder %s30, 1
      %p102 = por %p100, %p101
      %p103 = scmp.ne.s32.totalorder %s94, %s95
      %p104 = scmp.eq.s32.totalorder %s30, 0
      %p105 = por %p103, %p104
      %p106 = scmp.ne.s32.totalorder %s94, %s95
      %p107 = scmp.eq.s32.totalorder %s31, 1
      %p108 = por %p106, %p107
      %p110 = scmp.ne.s32.totalorder %s95, %s109
      %p111 = scmp.eq.s32.totalorder %s31, 0
      %p112 = por %p110, %p111
      %s114 = sadd.s32 %s113, 1
      %p117 = scmp.eq.s32.totalorder %s25, 1
      %p118 = scmp.ne.s32.totalorder %s113, %s115
      %p119 = scmp.eq.s32.totalorder %s25, 0
      %p120 = por %p118, %p119
      %p121 = scmp.ne.s32.totalorder %s113, %s115
      %p122 = scmp.eq.s32.totalorder %s30, 1
      %p123 = por %p121, %p122
      %p124 = scmp.ne.s32.totalorder %s115, %s116
      %p125 = scmp.eq.s32.totalorder %s30, 0
      %p126 = por %p124, %p125
      %p127 = scmp.ne.s32.totalorder %s115, %s116
      %p128 = scmp.eq.s32.totalorder %s31, 1
      %p129 = por %p127, %p128
      %p131 = scmp.ne.s32.totalorder %s116, %s130
      %p132 = scmp.eq.s32.totalorder %s31, 0
      %p133 = por %p131, %p132
      %s135 = sadd.s32 %s134, 1
      %p138 = scmp.eq.s32.totalorder %s25, 1
      %p139 = scmp.ne.s32.totalorder %s134, %s136
      %p140 = scmp.eq.s32.totalorder %s25, 0
      %p141 = por %p139, %p140
      %p142 = scmp.ne.s32.totalorder %s134, %s136
      %p143 = scmp.eq.s32.totalorder %s30, 1
      %p144 = por %p142, %p143
      %p145 = scmp.ne.s32.totalorder %s136, %s137
      %p146 = scmp.eq.s32.totalorder %s30, 0
      %p147 = por %p145, %p146
      %p148 = scmp.ne.s32.totalorder %s136, %s137
      %p149 = scmp.eq.s32.totalorder %s31, 1
      %p150 = por %p148, %p149
      %p152 = scmp.ne.s32.totalorder %s137, %s151
      %p153 = scmp.eq.s32.totalorder %s31, 0
      %p154 = por %p152, %p153
      %s156 = sadd.s32 %s155, 1
      %p159 = scmp.eq.s32.totalorder %s25, 1
      %p160 = scmp.ne.s32.totalorder %s155, %s157
      %p161 = scmp.eq.s32.totalorder %s25, 0
      %p162 = por %p160, %p161
      %p163 = scmp.ne.s32.totalorder %s155, %s157
      %p164 = scmp.eq.s32.totalorder %s30, 1
      %p165 = por %p163, %p164
      %p166 = scmp.ne.s32.totalorder %s157, %s158
      %p167 = scmp.eq.s32.totalorder %s30, 0
      %p168 = por %p166, %p167
      %p169 = scmp.ne.s32.totalorder %s157, %s158
      %p170 = scmp.eq.s32.totalorder %s31, 1
      %p171 = por %p169, %p170
      %p173 = scmp.ne.s32.totalorder %s158, %s172
      %p174 = scmp.eq.s32.totalorder %s31, 0
      %p175 = por %p173, %p174
      %s177 = sadd.s32 %s176, 1
      %p180 = scmp.eq.s32.totalorder %s25, 1
      %p181 = scmp.ne.s32.totalorder %s176, %s178
      %p182 = scmp.eq.s32.totalorder %s25, 0
      %p183 = por %p181, %p182
      %p184 = scmp.ne.s32.totalorder %s176, %s178
      %p185 = scmp.eq.s32.totalorder %s30, 1
      %p186 = por %p184, %p185
      %p187 = scmp.ne.s32.totalorder %s178, %s179
      %p188 = scmp.eq.s32.totalorder %s30, 0
      %p189 = por %p187, %p188
      %p190 = scmp.ne.s32.totalorder %s178, %s179
      %p191 = scmp.eq.s32.totalorder %s31, 1
      %p192 = por %p190, %p191
      %p194 = scmp.ne.s32.totalorder %s179, %s193
      %p195 = scmp.eq.s32.totalorder %s31, 0
      %p196 = por %p194, %p195
      %s197 = ssub.s32 %s32, %s44
      %s198 = ssub.s32 %s33, %s40
      %s199 = sor.u32 %s197, %s198
      %p200 = scmp.eq.s32.totalorder %s199, 0
      %s202 = sadd.s32 %s201, 1
      %s203 = scalar_select %p200, %s201, %s202
      %p206 = pneg %p200
      %p207 = scmp.eq.s32.totalorder %s25, 1
      %p208 = por %p206, %p207
      %p209 = scmp.ne.s32.totalorder %s201, %s204
      %p210 = scmp.eq.s32.totalorder %s25, 0
      %p211 = por %p209, %p210
      %p212 = scmp.ne.s32.totalorder %s201, %s204
      %p213 = scmp.eq.s32.totalorder %s30, 1
      %p214 = por %p212, %p213
      %p215 = scmp.ne.s32.totalorder %s204, %s205
      %p216 = scmp.eq.s32.totalorder %s30, 0
      %p217 = por %p215, %p216
      %p218 = scmp.ne.s32.totalorder %s204, %s205
      %p219 = scmp.eq.s32.totalorder %s31, 1
      %p220 = por %p218, %p219
      %p222 = scmp.ne.s32.totalorder %s205, %s221
      %p223 = scmp.eq.s32.totalorder %s31, 0
      %p224 = por %p222, %p223
      %s225 = ssub.s32 %s32, %s44
      %s226 = ssub.s32 %s33, %s40
      %s227 = sor.u32 %s225, %s226
      %p228 = scmp.eq.s32.totalorder %s227, 0
      %s230 = sadd.s32 %s229, 1
      %s231 = scalar_select %p228, %s229, %s230
      %p234 = pneg %p228
      %p235 = scmp.eq.s32.totalorder %s25, 1
      %p236 = por %p234, %p235
      %p237 = scmp.ne.s32.totalorder %s229, %s232
      %p238 = scmp.eq.s32.totalorder %s25, 0
      %p239 = por %p237, %p238
      %p240 = scmp.ne.s32.totalorder %s229, %s232
      %p241 = scmp.eq.s32.totalorder %s30, 1
      %p242 = por %p240, %p241
      %p243 = scmp.ne.s32.totalorder %s232, %s233
      %p244 = scmp.eq.s32.totalorder %s30, 0
      %p245 = por %p243, %p244
      %p246 = scmp.ne.s32.totalorder %s232, %s233
      %p247 = scmp.eq.s32.totalorder %s31, 1
      %p248 = por %p246, %p247
      %p250 = scmp.ne.s32.totalorder %s233, %s249
      %p251 = scmp.eq.s32.totalorder %s31, 0
      %p252 = por %p250, %p251
      %p253 = scmp.le.s32.totalorder 1, %s25
      %p254 = scmp.lt.s32.totalorder %s25, 3
      %p255 = pnand %p253, %p254
      %p256 = pneg %p255
      // Predicated region
      $region9: #{tpu_custom_call.1} parent=5 // pred_check
        _
      $region10: #{tpu_custom_call.1} parent=5 // pred_check_branch
        %258 = sbr.rel (%p255) target = $region12
      $region11: #{tpu_custom_call.1} parent=5 // pred_region
        %s259 = ssub.s32 %s25, 1
        // Predicated region
        $region13: #{tpu_custom_call.1} parent=11 // pred_check
          %p260 = pneg %p84
        $region14: #{tpu_custom_call.1} parent=11 // pred_check_branch
          %262 = sbr.rel (%p260) target = $region16
        $region15: #{tpu_custom_call.1} parent=11 // pred_region
          %264 = vsyncadd [#allocation9], 0
          %s265 = sshll.u32 %s1, 4
          %s266 = int_to_ptr.hbm [resolvable:$true] %s265
          %s267 = sshll.u32 [#allocation8], 4
          %s268 = int_to_ptr.vmem [resolvable:$true] %s267
          %273 = dma.hbm_to_vmem [thread:$0]  %s266, 512, %s268, [#allocation9], 128, 128, 8
        $region16: #{tpu_custom_call.1} parent=11 // pred_fallthru
          _
        // Predicated region
        $region17: #{tpu_custom_call.1} parent=11 // pred_check
          %p274 = pneg %p105
        $region18: #{tpu_custom_call.1} parent=11 // pred_check_branch
          %276 = sbr.rel (%p274) target = $region20
        $region19: #{tpu_custom_call.1} parent=11 // pred_region
          _
        $region20: #{tpu_custom_call.1} parent=11 // pred_fallthru
          _
        // Predicated region
        $region21: #{tpu_custom_call.1} parent=11 // pred_check
          %p277 = pneg %p126
        $region22: #{tpu_custom_call.1} parent=11 // pred_check_branch
          %279 = sbr.rel (%p277) target = $region24
        $region23: #{tpu_custom_call.1} parent=11 // pred_region
          %281 = vsyncadd [#allocation9], 0
          %s282 = sshll.u32 %s3, 4
          %s283 = int_to_ptr.hbm [resolvable:$true] %s282
          %s284 = sshll.u32 [#allocation10], 4
          %s285 = int_to_ptr.vmem [resolvable:$true] %s284
          %290 = dma.hbm_to_vmem [thread:$0]  %s283, 512, %s285, [#allocation9], 128, 128, 8
        $region24: #{tpu_custom_call.1} parent=11 // pred_fallthru
          _
        // Predicated region
        $region25: #{tpu_custom_call.1} parent=11 // pred_check
          %p291 = pneg %p147
        $region26: #{tpu_custom_call.1} parent=11 // pred_check_branch
          %293 = sbr.rel (%p291) target = $region28
        $region27: #{tpu_custom_call.1} parent=11 // pred_region
          _
        $region28: #{tpu_custom_call.1} parent=11 // pred_fallthru
          _
        // Predicated region
        $region29: #{tpu_custom_call.1} parent=11 // pred_check
          %p294 = pneg %p168
        $region30: #{tpu_custom_call.1} parent=11 // pred_check_branch
          %296 = sbr.rel (%p294) target = $region32
        $region31: #{tpu_custom_call.1} parent=11 // pred_region
          _
        $region32: #{tpu_custom_call.1} parent=11 // pred_fallthru
          _
        // Predicated region
        $region33: #{tpu_custom_call.1} parent=11 // pred_check
          %p297 = pneg %p189
        $region34: #{tpu_custom_call.1} parent=11 // pred_check_branch
          %299 = sbr.rel (%p297) target = $region36
        $region35: #{tpu_custom_call.1} parent=11 // pred_region
          _
        $region36: #{tpu_custom_call.1} parent=11 // pred_fallthru
          _
      $region12: #{tpu_custom_call.1} parent=5 // pred_fallthru
        _
      %p300 = scmp.lt.s32.totalorder %s25, 2
      // Predicated region
      $region37: #{tpu_custom_call.1} parent=5 // pred_check
        %p301 = pneg %p300
      $region38: #{tpu_custom_call.1} parent=5 // pred_check_branch
        %303 = sbr.rel (%p301) target = $region40
      $region39: #{tpu_custom_call.1} parent=5 // pred_region
        // Predicated region
        $region41: #{tpu_custom_call.1} parent=39 // pred_check
          %p304 = pneg %p57
        $region42: #{tpu_custom_call.1} parent=39 // pred_check_branch
          %306 = sbr.rel (%p304) target = $region44
        $region43: #{tpu_custom_call.1} parent=39 // pred_region
          %s307 = sand.u32 %s47, 1
          %s308 = scalar_lea.sflag [#allocation6], %s307
          %s309 = sand.u32 %s47, 1
          %s310 = smul.addr %s309, 8
          %s311 = scalar_lea.vmem [#allocation5], %s310
          %313 = vsyncadd %s308, 0
          %s314 = smul.addr %s32, 8
          %s315 = scalar_lea.hbm %s0, %s314
          %s317 = sshll.u32 %s315, 4
          %s318 = int_to_ptr.hbm [resolvable:$true] %s317
          %s319 = sshll.u32 %s311, 4
          %s320 = int_to_ptr.vmem [resolvable:$true] %s319
          %322 = dma.hbm_to_vmem [thread:$0]  %s318, 128, %s320, %s308
        $region44: #{tpu_custom_call.1} parent=39 // pred_fallthru
          _
      $region40: #{tpu_custom_call.1} parent=5 // pred_fallthru
        _
      %p323 = scmp.le.s32.totalorder 1, %s25
      %p324 = scmp.lt.s32.totalorder %s25, 3
      %p325 = pnand %p323, %p324
      %p326 = pneg %p325
      // Predicated region
      $region45: #{tpu_custom_call.1} parent=5 // pred_check
        _
      $region46: #{tpu_custom_call.1} parent=5 // pred_check_branch
        %328 = sbr.rel (%p325) target = $region48
      $region47: #{tpu_custom_call.1} parent=5 // pred_region
        %s329 = ssub.s32 %s25, 1
        %s330 = sand.u32 %s50, 1
        %s331 = scalar_lea.sflag [#allocation6], %s330
        %s332 = sand.u32 %s50, 1
        %s333 = smul.addr %s332, 8
        %s334 = scalar_lea.vmem [#allocation5], %s333
        // Predicated region
        $region49: #{tpu_custom_call.1} parent=47 // pred_check
          %p335 = pneg %p63
        $region50: #{tpu_custom_call.1} parent=47 // pred_check_branch
          %337 = sbr.rel (%p335) target = $region52
        $region51: #{tpu_custom_call.1} parent=47 // pred_region
          %339 = dma.done %s331, 128
        $region52: #{tpu_custom_call.1} parent=47 // pred_fallthru
          _
        // Predicated region
        $region53: #{tpu_custom_call.1} parent=47 // pred_check
          %p340 = pneg %p84
        $region54: #{tpu_custom_call.1} parent=47 // pred_check_branch
          %342 = sbr.rel (%p340) target = $region56
        $region55: #{tpu_custom_call.1} parent=47 // pred_region
          %344 = dma.done [#allocation9], 512
        $region56: #{tpu_custom_call.1} parent=47 // pred_fallthru
          _
        // Predicated region
        $region57: #{tpu_custom_call.1} parent=47 // pred_check
          %p345 = pneg %p126
        $region58: #{tpu_custom_call.1} parent=47 // pred_check_branch
          %347 = sbr.rel (%p345) target = $region60
        $region59: #{tpu_custom_call.1} parent=47 // pred_region
          %349 = dma.done [#allocation9], 512
        $region60: #{tpu_custom_call.1} parent=47 // pred_fallthru
          _
        %s350 = sand.u32 %s50, 1
        %s351 = scalar_lea.sflag [#allocation6], %s350
        %s352 = sand.u32 %s50, 1
        %s353 = smul.addr %s352, 8
        %s354 = scalar_lea.vmem [#allocation5], %s353
        %p355 = pneg %p63
        %p356 = pneg %p60
        %p357 = pneg %p84
        %p358 = pneg %p81
        %p359 = pneg %p105
        %p360 = pneg %p102
        %p361 = pneg %p126
        %p362 = pneg %p123
        %p363 = pneg %p147
        %p364 = pneg %p144
        %p365 = pneg %p168
        %p366 = pneg %p165
        %p367 = pneg %p189
        %p368 = pneg %p186
        %p369 = pneg %p217
        %p370 = pneg %p214
        %s371 = sand.u32 %s204, 1
        %s372 = scalar_lea.sflag [#allocation7], %s371
        %s373 = sand.u32 %s204, 1
        %s374 = smul.addr %s373, 8
        %s375 = scalar_lea.vmem [#allocation11], %s374
        %p376 = pneg %p245
        %p377 = pneg %p242
        %s378 = sand.u32 %s232, 1
        %s379 = scalar_lea.sflag [#allocation13], %s378
        %s380 = sand.u32 %s232, 1
        %s381 = smul.addr %s380, 32
        %s382 = scalar_lea.vmem [#allocation12], %s381
        %p383 = scmp.eq.s32.totalorder %s35, 0
        // Predicated region
        $region61: #{tpu_custom_call.1} parent=47 // pred_check
          %p384 = pneg %p383
        $region62: #{tpu_custom_call.1} parent=47 // pred_check_branch
          %386 = sbr.rel (%p384) target = $region64
        $region63: #{tpu_custom_call.1} parent=47 // pred_region
          %v387 = vld [vmem:[%s334] sm:$0xff]
          %v388 = vld [vmem:[#allocation8] sm:$0xff]
          %v389 = vld [vmem:[#allocation8 + $0x8] sm:$0xff]
          %v390 = vld [vmem:[#allocation8 + $0x10] sm:$0xff]
          %v391 = vld [vmem:[#allocation8 + $0x18] sm:$0xff]
          %v392 = vld [vmem:[%s2] sm:$0x1]
          %v394 = vperm.slane %v392, 0
          %vm396 = vcmask 261120
          %v398 = vsel %vm396, %v387, 0
          %400 = vmatpush.msra.mxu0 0.0
          %401 = vmatpush.msra.mxu0 0.0
          %402 = vmatpush.msra.mxu0 0.0
          %403 = vmatpush.msra.mxu0 0.0
          %404 = vmatpush.msra.mxu0 0.0
          %405 = vmatpush.msra.mxu0 0.0
          %406 = vmatpush.msra.mxu0 0.0
          %407 = vmatpush.msra.mxu0 0.0
          %408 = vmatpush.msra.mxu0 0.0
          %409 = vmatpush.msra.mxu0 0.0
          %410 = vmatpush.msra.mxu0 0.0
          %411 = vmatpush.msra.mxu0 0.0
          %412 = vmatpush.msra.mxu0 %v391
          %413 = vmatpush.msra.mxu0 %v390
          %414 = vmatpush.msra.mxu0 %v389
          %415 = vmatpush.msra.mxu0 %v388
          %416 = vmatmul.f32.gmra.mxu0 %v398
          %v417 = vpop.f32.mrf.mxu0
          %v418 = vadd.f32 %v394, %v417
          %419 = vdwg.mxu0
          %421 = vrot.lane.b32.xlu0 %v418, 120
          %v422 = vpop.permute.xlu0 %421
          %424 = vrot.lane.b32.xlu0 %v418, 112
          %v425 = vpop.permute.xlu0 %424
          %427 = vrot.lane.b32.xlu0 %v418, 104
          %v428 = vpop.permute.xlu0 %427
          %v430 = vrot.slane %v425, 4
          %vm431 = vcmask 1047556
          %v432 = vsel %vm431, %v430, %v418
          %v433 = vrot.slane %v418, 4
          %v434 = vsel %vm431, %v425, %v433
          %v436 = vunpack.c.l.s4 1983009808
          %v437 = vunpack.c.0.s8 %v436
          %v438 = vperm.slane %v432, %v437
          %v440 = vunpack.c.l.s4 1983009808
          %v441 = vunpack.c.0.s8 %v440
          %v442 = vperm.slane %v434, %v441
          %v443 = vrot.slane %v428, 4
          %v444 = vsel %vm431, %v443, %v422
          %v445 = vrot.slane %v422, 4
          %v446 = vsel %vm431, %v428, %v445
          %v448 = vunpack.c.l.s4 1983009808
          %v449 = vunpack.c.0.s8 %v448
          %v450 = vperm.slane %v444, %v449
          %v452 = vunpack.c.l.s4 1983009808
          %v453 = vunpack.c.0.s8 %v452
          %v454 = vperm.slane %v446, %v453
          %v455 = vrot.slane %v450, 4
          %v456 = vsel %vm431, %v455, %v438
          %v457 = vrot.slane %v438, 4
          %v458 = vsel %vm431, %v450, %v457
          %v460 = vunpack.c.l.s4 1934713408
          %v461 = vunpack.c.0.s8 %v460
          %v462 = vperm.slane %v456, %v461
          %v464 = vunpack.c.l.s4 1934713408
          %v465 = vunpack.c.0.s8 %v464
          %v466 = vperm.slane %v458, %v465
          %v467 = vrot.slane %v454, 4
          %v468 = vsel %vm431, %v467, %v442
          %v469 = vrot.slane %v442, 4
          %v470 = vsel %vm431, %v454, %v469
          %v472 = vunpack.c.l.s4 1934713408
          %v473 = vunpack.c.0.s8 %v472
          %v474 = vperm.slane %v468, %v473
          %v476 = vunpack.c.l.s4 1934713408
          %v477 = vunpack.c.0.s8 %v476
          %v478 = vperm.slane %v470, %v477
          %v479 = vrot.slane %v462, 4
          %v480 = vsel %vm431, 0.0, %v479
          %v481 = vrot.slane %v466, 4
          %v482 = vsel %vm431, 0.0, %v481
          %v483 = vrot.slane %v474, 4
          %v484 = vsel %vm431, 0.0, %v483
          %v485 = vrot.slane %v478, 4
          %v486 = vsel %vm431, 0.0, %v485
          %v487 = vsel %vm431, %v481, %v462
          %v489 = vunpack.c.l.s4 1983009808
          %v490 = vunpack.c.0.s8 %v489
          %v491 = vperm.slane %v487, %v490
          %v492 = vrot.slane %v482, 4
          %v493 = vsel %vm431, %v492, %v480
          %v495 = vunpack.c.l.s4 1983009808
          %v496 = vunpack.c.0.s8 %v495
          %v497 = vperm.slane %v493, %v496
          %v498 = vsel %vm431, %v485, %v474
          %v500 = vunpack.c.l.s4 1983009808
          %v501 = vunpack.c.0.s8 %v500
          %v502 = vperm.slane %v498, %v501
          %v503 = vrot.slane %v486, 4
          %v504 = vsel %vm431, %v503, %v484
          %v506 = vunpack.c.l.s4 1983009808
          %v507 = vunpack.c.0.s8 %v506
          %v508 = vperm.slane %v504, %v507
          %v509 = vrot.slane %v497, 4
          %v510 = vsel %vm431, %v509, %v491
          %v511 = vrot.slane %v491, 4
          %v512 = vsel %vm431, %v497, %v511
          %v514 = vunpack.c.l.s4 1934713408
          %v515 = vunpack.c.0.s8 %v514
          %v516 = vperm.slane %v510, %v515
          %v518 = vunpack.c.l.s4 1934713408
          %v519 = vunpack.c.0.s8 %v518
          %v520 = vperm.slane %v512, %v519
          %v521 = vrot.slane %v508, 4
          %v522 = vsel %vm431, %v521, %v502
          %v523 = vrot.slane %v502, 4
          %v524 = vsel %vm431, %v508, %v523
          %v526 = vunpack.c.l.s4 1934713408
          %v527 = vunpack.c.0.s8 %v526
          %v528 = vperm.slane %v522, %v527
          %v530 = vunpack.c.l.s4 1934713408
          %v531 = vunpack.c.0.s8 %v530
          %v532 = vperm.slane %v524, %v531
          %v533 = vrot.slane %v528, 4
          %v534 = vsel %vm431, %v533, %v516
          %v535 = vrot.slane %v516, 4
          %v536 = vsel %vm431, %v528, %v535
          %v537 = vrot.slane %v532, 4
          %v538 = vsel %vm431, %v537, %v520
          %v539 = vrot.slane %v520, 4
          %v540 = vsel %vm431, %v532, %v539
          %vm541 = vcmask 64512
          %542 = vst.msk [vmem:[#allocation2] sm:$0xff] %vm541, %v534
          %543 = vst.msk [vmem:[#allocation2 + $0x8] sm:$0xff] %vm541, %v536
          %544 = vst.msk [vmem:[#allocation2 + $0x10] sm:$0xff] %vm541, %v538
          %545 = vst.msk [vmem:[#allocation2 + $0x18] sm:$0xff] %vm541, %v540
          %546 = vrot.lane.b32.xlu0 %v418, 96
          %v547 = vpop.permute.xlu0 %546
          %548 = vrot.lane.b32.xlu0 %v422, 96
          %v549 = vpop.permute.xlu0 %548
          %550 = vrot.lane.b32.xlu0 %v425, 96
          %v551 = vpop.permute.xlu0 %550
          %552 = vrot.lane.b32.xlu0 %v428, 96
          %v553 = vpop.permute.xlu0 %552
          %v558 = vrot.slane %v551, 4
          %v559 = vsel %vm431, %v558, %v547
          %v560 = vrot.slane %v547, 4
          %v561 = vsel %vm431, %v551, %v560
          %v563 = vunpack.c.l.s4 1983009808
          %v564 = vunpack.c.0.s8 %v563
          %v565 = vperm.slane %v559, %v564
          %v567 = vunpack.c.l.s4 1983009808
          %v568 = vunpack.c.0.s8 %v567
          %v569 = vperm.slane %v561, %v568
          %v570 = vrot.slane %v553, 4
          %v571 = vsel %vm431, %v570, %v549
          %v572 = vrot.slane %v549, 4
          %v573 = vsel %vm431, %v553, %v572
          %v575 = vunpack.c.l.s4 1983009808
          %v576 = vunpack.c.0.s8 %v575
          %v577 = vperm.slane %v571, %v576
          %v579 = vunpack.c.l.s4 1983009808
          %v580 = vunpack.c.0.s8 %v579
          %v581 = vperm.slane %v573, %v580
          %v582 = vrot.slane %v577, 4
          %v583 = vsel %vm431, %v582, %v565
          %v584 = vrot.slane %v565, 4
          %v585 = vsel %vm431, %v577, %v584
          %v587 = vunpack.c.l.s4 1934713408
          %v588 = vunpack.c.0.s8 %v587
          %v589 = vperm.slane %v583, %v588
          %v591 = vunpack.c.l.s4 1934713408
          %v592 = vunpack.c.0.s8 %v591
          %v593 = vperm.slane %v585, %v592
          %v594 = vrot.slane %v581, 4
          %v595 = vsel %vm431, %v594, %v569
          %v596 = vrot.slane %v569, 4
          %v597 = vsel %vm431, %v581, %v596
          %v599 = vunpack.c.l.s4 1934713408
          %v600 = vunpack.c.0.s8 %v599
          %v601 = vperm.slane %v595, %v600
          %v603 = vunpack.c.l.s4 1934713408
          %v604 = vunpack.c.0.s8 %v603
          %v605 = vperm.slane %v597, %v604
          %v606 = vrot.slane %v589, 4
          %v607 = vsel %vm431, 0.0, %v606
          %v608 = vrot.slane %v593, 4
          %v609 = vsel %vm431, 0.0, %v608
          %v610 = vrot.slane %v601, 4
          %v611 = vsel %vm431, 0.0, %v610
          %v612 = vrot.slane %v605, 4
          %v613 = vsel %vm431, 0.0, %v612
          %v614 = vsel %vm431, %v608, %v589
          %v616 = vunpack.c.l.s4 1983009808
          %v617 = vunpack.c.0.s8 %v616
          %v618 = vperm.slane %v614, %v617
          %v619 = vrot.slane %v609, 4
          %v620 = vsel %vm431, %v619, %v607
          %v622 = vunpack.c.l.s4 1983009808
          %v623 = vunpack.c.0.s8 %v622
          %v624 = vperm.slane %v620, %v623
          %v625 = vsel %vm431, %v612, %v601
          %v627 = vunpack.c.l.s4 1983009808
          %v628 = vunpack.c.0.s8 %v627
          %v629 = vperm.slane %v625, %v628
          %v630 = vrot.slane %v613, 4
          %v631 = vsel %vm431, %v630, %v611
          %v633 = vunpack.c.l.s4 1983009808
          %v634 = vunpack.c.0.s8 %v633
          %v635 = vperm.slane %v631, %v634
          %v636 = vrot.slane %v624, 4
          %v637 = vsel %vm431, %v636, %v618
          %v638 = vrot.slane %v618, 4
          %v639 = vsel %vm431, %v624, %v638
          %v641 = vunpack.c.l.s4 1934713408
          %v642 = vunpack.c.0.s8 %v641
          %v643 = vperm.slane %v637, %v642
          %v645 = vunpack.c.l.s4 1934713408
          %v646 = vunpack.c.0.s8 %v645
          %v647 = vperm.slane %v639, %v646
          %v648 = vrot.slane %v635, 4
          %v649 = vsel %vm431, %v648, %v629
          %v650 = vrot.slane %v629, 4
          %v651 = vsel %vm431, %v635, %v650
          %v653 = vunpack.c.l.s4 1934713408
          %v654 = vunpack.c.0.s8 %v653
          %v655 = vperm.slane %v649, %v654
          %v657 = vunpack.c.l.s4 1934713408
          %v658 = vunpack.c.0.s8 %v657
          %v659 = vperm.slane %v651, %v658
          %v660 = vrot.slane %v655, 4
          %v661 = vsel %vm431, %v660, %v643
          %v662 = vrot.slane %v643, 4
          %v663 = vsel %vm431, %v655, %v662
          %v664 = vrot.slane %v659, 4
          %v665 = vsel %vm431, %v664, %v647
          %v666 = vrot.slane %v647, 4
          %v667 = vsel %vm431, %v659, %v666
          %668 = vst.msk [vmem:[#allocation3] sm:$0xff] %vm541, %v661
          %669 = vst.msk [vmem:[#allocation3 + $0x8] sm:$0xff] %vm541, %v663
          %670 = vst.msk [vmem:[#allocation3 + $0x10] sm:$0xff] %vm541, %v665
          %671 = vst.msk [vmem:[#allocation3 + $0x18] sm:$0xff] %vm541, %v667
          %672 = vrot.lane.b32.xlu0 %v418, 64
          %v673 = vpop.permute.xlu0 %672
          %674 = vrot.lane.b32.xlu0 %v422, 64
          %v675 = vpop.permute.xlu0 %674
          %676 = vrot.lane.b32.xlu0 %v425, 64
          %v677 = vpop.permute.xlu0 %676
          %678 = vrot.lane.b32.xlu0 %v428, 64
          %v679 = vpop.permute.xlu0 %678
          %v684 = vrot.slane %v677, 4
          %v685 = vsel %vm431, %v684, %v673
          %v686 = vrot.slane %v673, 4
          %v687 = vsel %vm431, %v677, %v686
          %v689 = vunpack.c.l.s4 1983009808
          %v690 = vunpack.c.0.s8 %v689
          %v691 = vperm.slane %v685, %v690
          %v693 = vunpack.c.l.s4 1983009808
          %v694 = vunpack.c.0.s8 %v693
          %v695 = vperm.slane %v687, %v694
          %v696 = vrot.slane %v679, 4
          %v697 = vsel %vm431, %v696, %v675
          %v698 = vrot.slane %v675, 4
          %v699 = vsel %vm431, %v679, %v698
          %v701 = vunpack.c.l.s4 1983009808
          %v702 = vunpack.c.0.s8 %v701
          %v703 = vperm.slane %v697, %v702
          %v705 = vunpack.c.l.s4 1983009808
          %v706 = vunpack.c.0.s8 %v705
          %v707 = vperm.slane %v699, %v706
          %v708 = vrot.slane %v703, 4
          %v709 = vsel %vm431, %v708, %v691
          %v710 = vrot.slane %v691, 4
          %v711 = vsel %vm431, %v703, %v710
          %v713 = vunpack.c.l.s4 1934713408
          %v714 = vunpack.c.0.s8 %v713
          %v715 = vperm.slane %v709, %v714
          %v717 = vunpack.c.l.s4 1934713408
          %v718 = vunpack.c.0.s8 %v717
          %v719 = vperm.slane %v711, %v718
          %v720 = vrot.slane %v707, 4
          %v721 = vsel %vm431, %v720, %v695
          %v722 = vrot.slane %v695, 4
          %v723 = vsel %vm431, %v707, %v722
          %v725 = vunpack.c.l.s4 1934713408
          %v726 = vunpack.c.0.s8 %v725
          %v727 = vperm.slane %v721, %v726
          %v729 = vunpack.c.l.s4 1934713408
          %v730 = vunpack.c.0.s8 %v729
          %v731 = vperm.slane %v723, %v730
          %v732 = vrot.slane %v715, 4
          %v733 = vsel %vm431, 0.0, %v732
          %v734 = vrot.slane %v719, 4
          %v735 = vsel %vm431, 0.0, %v734
          %v736 = vrot.slane %v727, 4
          %v737 = vsel %vm431, 0.0, %v736
          %v738 = vrot.slane %v731, 4
          %v739 = vsel %vm431, 0.0, %v738
          %v740 = vsel %vm431, %v734, %v715
          %v742 = vunpack.c.l.s4 1983009808
          %v743 = vunpack.c.0.s8 %v742
          %v744 = vperm.slane %v740, %v743
          %v745 = vrot.slane %v735, 4
          %v746 = vsel %vm431, %v745, %v733
          %v748 = vunpack.c.l.s4 1983009808
          %v749 = vunpack.c.0.s8 %v748
          %v750 = vperm.slane %v746, %v749
          %v751 = vsel %vm431, %v738, %v727
          %v753 = vunpack.c.l.s4 1983009808
          %v754 = vunpack.c.0.s8 %v753
          %v755 = vperm.slane %v751, %v754
          %v756 = vrot.slane %v739, 4
          %v757 = vsel %vm431, %v756, %v737
          %v759 = vunpack.c.l.s4 1983009808
          %v760 = vunpack.c.0.s8 %v759
          %v761 = vperm.slane %v757, %v760
          %v762 = vrot.slane %v750, 4
          %v763 = vsel %vm431, %v762, %v744
          %v764 = vrot.slane %v744, 4
          %v765 = vsel %vm431, %v750, %v764
          %v767 = vunpack.c.l.s4 1934713408
          %v768 = vunpack.c.0.s8 %v767
          %v769 = vperm.slane %v763, %v768
          %v771 = vunpack.c.l.s4 1934713408
          %v772 = vunpack.c.0.s8 %v771
          %v773 = vperm.slane %v765, %v772
          %v774 = vrot.slane %v761, 4
          %v775 = vsel %vm431, %v774, %v755
          %v776 = vrot.slane %v755, 4
          %v777 = vsel %vm431, %v761, %v776
          %v779 = vunpack.c.l.s4 1934713408
          %v780 = vunpack.c.0.s8 %v779
          %v781 = vperm.slane %v775, %v780
          %v783 = vunpack.c.l.s4 1934713408
          %v784 = vunpack.c.0.s8 %v783
          %v785 = vperm.slane %v777, %v784
          %v786 = vrot.slane %v781, 4
          %v787 = vsel %vm431, %v786, %v769
          %v788 = vrot.slane %v769, 4
          %v789 = vsel %vm431, %v781, %v788
          %v790 = vrot.slane %v785, 4
          %v791 = vsel %vm431, %v790, %v773
          %v792 = vrot.slane %v773, 4
          %v793 = vsel %vm431, %v785, %v792
          %794 = vst.msk [vmem:[#allocation4] sm:$0xff] %vm541, %v787
          %795 = vst.msk [vmem:[#allocation4 + $0x8] sm:$0xff] %vm541, %v789
          %796 = vst.msk [vmem:[#allocation4 + $0x10] sm:$0xff] %vm541, %v791
          %797 = vst.msk [vmem:[#allocation4 + $0x18] sm:$0xff] %vm541, %v793
        $region64: #{tpu_custom_call.1} parent=47 // pred_fallthru
          _
        %s798 = smul.u32 %s35, 8
        %s799 = scalar_lea.vmem [#allocation2], %s798
        %v800 = vld [vmem:[%s799] sm:$0xff]
        %v801 = vld [vmem:[%s799 + $0x8] sm:$0xff]
        %v802 = vld [vmem:[%s799 + $0x10] sm:$0xff]
        %v803 = vld [vmem:[%s799 + $0x18] sm:$0xff]
        %v804 = vld [vmem:[#allocation3] sm:$0xff]
        %v805 = vld [vmem:[#allocation3 + $0x8] sm:$0xff]
        %v806 = vld [vmem:[#allocation3 + $0x10] sm:$0xff]
        %v807 = vld [vmem:[#allocation3 + $0x18] sm:$0xff]
        %vm808 = vcmask 64512
        %v810 = vsel %vm808, %v800, 0
        %v813 = vsel %vm808, %v804, 0
        %815 = vmatpush.xpose.msra.mxu0 0.0
        %816 = vmatpush.xpose.msra.mxu0 0.0
        %817 = vmatpush.xpose.msra.mxu0 0.0
        %818 = vmatpush.xpose.msra.mxu0 0.0
        %819 = vmatpush.xpose.msra.mxu0 0.0
        %820 = vmatpush.xpose.msra.mxu0 0.0
        %821 = vmatpush.xpose.msra.mxu0 0.0
        %822 = vmatpush.xpose.msra.mxu0 0.0
        %823 = vmatpush.xpose.msra.mxu0 0.0
        %824 = vmatpush.xpose.msra.mxu0 0.0
        %825 = vmatpush.xpose.msra.mxu0 0.0
        %826 = vmatpush.xpose.msra.mxu0 0.0
        %827 = vmatpush.xpose.msra.mxu0 0.0
        %828 = vmatpush.xpose.msra.mxu0 0.0
        %829 = vmatpush.xpose.msra.mxu0 0.0
        %830 = vmatpush.xpose.msra.mxu0 %v813
        %831 = vmatmul.f32.gmra.mxu0 %v810
        %v832 = vpop.f32.mrf.mxu0
        %v833 = vadd.f32 0.0, %v832
        %834 = vdwg.mxu0
        %v836 = vsel %vm808, %v801, 0
        %v839 = vsel %vm808, %v805, 0
        %841 = vmatpush.xpose.msra.mxu0 0.0
        %842 = vmatpush.xpose.msra.mxu0 0.0
        %843 = vmatpush.xpose.msra.mxu0 0.0
        %844 = vmatpush.xpose.msra.mxu0 0.0
        %845 = vmatpush.xpose.msra.mxu0 0.0
        %846 = vmatpush.xpose.msra.mxu0 0.0
        %847 = vmatpush.xpose.msra.mxu0 0.0
        %848 = vmatpush.xpose.msra.mxu0 0.0
        %849 = vmatpush.xpose.msra.mxu0 0.0
        %850 = vmatpush.xpose.msra.mxu0 0.0
        %851 = vmatpush.xpose.msra.mxu0 0.0
        %852 = vmatpush.xpose.msra.mxu0 0.0
        %853 = vmatpush.xpose.msra.mxu0 0.0
        %854 = vmatpush.xpose.msra.mxu0 0.0
        %855 = vmatpush.xpose.msra.mxu0 0.0
        %856 = vmatpush.xpose.msra.mxu0 %v839
        %857 = vmatmul.f32.gmra.mxu0 %v836
        %v858 = vpop.f32.mrf.mxu0
        %v859 = vadd.f32 0.0, %v858
        %860 = vdwg.mxu0
        %v862 = vsel %vm808, %v802, 0
        %v865 = vsel %vm808, %v806, 0
        %867 = vmatpush.xpose.msra.mxu0 0.0
        %868 = vmatpush.xpose.msra.mxu0 0.0
        %869 = vmatpush.xpose.msra.mxu0 0.0
        %870 = vmatpush.xpose.msra.mxu0 0.0
        %871 = vmatpush.xpose.msra.mxu0 0.0
        %872 = vmatpush.xpose.msra.mxu0 0.0
        %873 = vmatpush.xpose.msra.mxu0 0.0
        %874 = vmatpush.xpose.msra.mxu0 0.0
        %875 = vmatpush.xpose.msra.mxu0 0.0
        %876 = vmatpush.xpose.msra.mxu0 0.0
        %877 = vmatpush.xpose.msra.mxu0 0.0
        %878 = vmatpush.xpose.msra.mxu0 0.0
        %879 = vmatpush.xpose.msra.mxu0 0.0
        %880 = vmatpush.xpose.msra.mxu0 0.0
        %881 = vmatpush.xpose.msra.mxu0 0.0
        %882 = vmatpush.xpose.msra.mxu0 %v865
        %883 = vmatmul.f32.gmra.mxu0 %v862
        %v884 = vpop.f32.mrf.mxu0
        %v885 = vadd.f32 0.0, %v884
        %886 = vdwg.mxu0
        %v888 = vsel %vm808, %v803, 0
        %v891 = vsel %vm808, %v807, 0
        %893 = vmatpush.xpose.msra.mxu0 0.0
        %894 = vmatpush.xpose.msra.mxu0 0.0
        %895 = vmatpush.xpose.msra.mxu0 0.0
        %896 = vmatpush.xpose.msra.mxu0 0.0
        %897 = vmatpush.xpose.msra.mxu0 0.0
        %898 = vmatpush.xpose.msra.mxu0 0.0
        %899 = vmatpush.xpose.msra.mxu0 0.0
        %900 = vmatpush.xpose.msra.mxu0 0.0
        %901 = vmatpush.xpose.msra.mxu0 0.0
        %902 = vmatpush.xpose.msra.mxu0 0.0
        %903 = vmatpush.xpose.msra.mxu0 0.0
        %904 = vmatpush.xpose.msra.mxu0 0.0
        %905 = vmatpush.xpose.msra.mxu0 0.0
        %906 = vmatpush.xpose.msra.mxu0 0.0
        %907 = vmatpush.xpose.msra.mxu0 0.0
        %908 = vmatpush.xpose.msra.mxu0 %v891
        %909 = vmatmul.f32.gmra.mxu0 %v888
        %v910 = vpop.f32.mrf.mxu0
        %v911 = vadd.f32 0.0, %v910
        %912 = vdwg.mxu0
        %v913 = vsel %vm808, %v833, -inf
        %914 = vmax.xlane.f32.xlu0 %v913
        %v915 = vpop.xlane.xlu0 %914
        %v916 = vsel %vm808, %v859, -inf
        %917 = vmax.xlane.f32.xlu0 %v916
        %v918 = vpop.xlane.xlu0 %917
        %v919 = vsel %vm808, %v885, -inf
        %920 = vmax.xlane.f32.xlu0 %v919
        %v921 = vpop.xlane.xlu0 %920
        %v922 = vsel %vm808, %v911, -inf
        %923 = vmax.xlane.f32.xlu0 %v922
        %v924 = vpop.xlane.xlu0 %923
        %v925 = vsub.f32 %v833, %v915
        %v926 = vsub.f32 %v859, %v918
        %v927 = vsub.f32 %v885, %v921
        %v928 = vsub.f32 %v911, %v924
        %v929 = vmul.f32 %v925, 1.442695
        %v930 = vpow.pop %v929
        %v931 = vmul.f32 %v926, 1.442695
        %v932 = vpow.pop %v931
        %v933 = vmul.f32 %v927, 1.442695
        %v934 = vpow.pop %v933
        %v935 = vmul.f32 %v928, 1.442695
        %v936 = vpow.pop %v935
        %v937 = vsel %vm808, %v930, 0.0
        %938 = vadd.xlane.f32.xlu0 %v937
        %v939 = vpop.xlane.xlu0 %938
        %v940 = vsel %vm808, %v932, 0.0
        %941 = vadd.xlane.f32.xlu0 %v940
        %v942 = vpop.xlane.xlu0 %941
        %v943 = vsel %vm808, %v934, 0.0
        %944 = vadd.xlane.f32.xlu0 %v943
        %v945 = vpop.xlane.xlu0 %944
        %v946 = vsel %vm808, %v936, 0.0
        %947 = vadd.xlane.f32.xlu0 %v946
        %v948 = vpop.xlane.xlu0 %947
        %v949 = vrcp.pop %v939
        %v950 = vrcp.pop %v942
        %v951 = vrcp.pop %v945
        %v952 = vrcp.pop %v948
        %v953 = vmul.f32 %v930, %v949
        %v954 = vmul.f32 %v932, %v950
        %v955 = vmul.f32 %v934, %v951
        %v956 = vmul.f32 %v936, %v952
        %957 = vst.msk [vmem:[%s382] sm:$0xff] %vm808, %v953
        %958 = vst.msk [vmem:[%s382 + $0x8] sm:$0xff] %vm808, %v954
        %959 = vst.msk [vmem:[%s382 + $0x10] sm:$0xff] %vm808, %v955
        %960 = vst.msk [vmem:[%s382 + $0x18] sm:$0xff] %vm808, %v956
        %v961 = vld [vmem:[#allocation4] sm:$0xff]
        %v962 = vld [vmem:[#allocation4 + $0x8] sm:$0xff]
        %v963 = vld [vmem:[#allocation4 + $0x10] sm:$0xff]
        %v964 = vld [vmem:[#allocation4 + $0x18] sm:$0xff]
        %v966 = vsel %vm808, %v953, 0
        %968 = vmatpush.msra.mxu0 0.0
        %969 = vmatpush.msra.mxu0 0.0
        %970 = vmatpush.msra.mxu0 0.0
        %971 = vmatpush.msra.mxu0 0.0
        %972 = vmatpush.msra.mxu0 0.0
        %973 = vmatpush.msra.mxu0 0.0
        %974 = vmatpush.msra.mxu0 0.0
        %975 = vmatpush.msra.mxu0 0.0
        %976 = vmatpush.msra.mxu0 0.0
        %977 = vmatpush.msra.mxu0 0.0
        %978 = vmatpush.msra.mxu0 0.0
        %979 = vmatpush.msra.mxu0 0.0
        %980 = vmatpush.msra.mxu0 0.0
        %981 = vmatpush.msra.mxu0 0.0
        %982 = vmatpush.msra.mxu0 0.0
        %983 = vmatpush.msra.mxu0 %v961
        %984 = vmatmul.f32.gmra.mxu0 %v966
        %v985 = vpop.f32.mrf.mxu0
        %v986 = vadd.f32 0.0, %v985
        %987 = vdwg.mxu0
        %v989 = vsel %vm808, %v954, 0
        %991 = vmatpush.msra.mxu0 0.0
        %992 = vmatpush.msra.mxu0 0.0
        %993 = vmatpush.msra.mxu0 0.0
        %994 = vmatpush.msra.mxu0 0.0
        %995 = vmatpush.msra.mxu0 0.0
        %996 = vmatpush.msra.mxu0 0.0
        %997 = vmatpush.msra.mxu0 0.0
        %998 = vmatpush.msra.mxu0 0.0
        %999 = vmatpush.msra.mxu0 0.0
        %1000 = vmatpush.msra.mxu0 0.0
        %1001 = vmatpush.msra.mxu0 0.0
        %1002 = vmatpush.msra.mxu0 0.0
        %1003 = vmatpush.msra.mxu0 0.0
        %1004 = vmatpush.msra.mxu0 0.0
        %1005 = vmatpush.msra.mxu0 0.0
        %1006 = vmatpush.msra.mxu0 %v962
        %1007 = vmatmul.f32.gmra.mxu0 %v989
        %v1008 = vpop.f32.mrf.mxu0
        %v1009 = vadd.f32 0.0, %v1008
        %1010 = vdwg.mxu0
        %v1012 = vsel %vm808, %v955, 0
        %1014 = vmatpush.msra.mxu0 0.0
        %1015 = vmatpush.msra.mxu0 0.0
        %1016 = vmatpush.msra.mxu0 0.0
        %1017 = vmatpush.msra.mxu0 0.0
        %1018 = vmatpush.msra.mxu0 0.0
        %1019 = vmatpush.msra.mxu0 0.0
        %1020 = vmatpush.msra.mxu0 0.0
        %1021 = vmatpush.msra.mxu0 0.0
        %1022 = vmatpush.msra.mxu0 0.0
        %1023 = vmatpush.msra.mxu0 0.0
        %1024 = vmatpush.msra.mxu0 0.0
        %1025 = vmatpush.msra.mxu0 0.0
        %1026 = vmatpush.msra.mxu0 0.0
        %1027 = vmatpush.msra.mxu0 0.0
        %1028 = vmatpush.msra.mxu0 0.0
        %1029 = vmatpush.msra.mxu0 %v963
        %1030 = vmatmul.f32.gmra.mxu0 %v1012
        %v1031 = vpop.f32.mrf.mxu0
        %v1032 = vadd.f32 0.0, %v1031
        %1033 = vdwg.mxu0
        %v1035 = vsel %vm808, %v956, 0
        %1037 = vmatpush.msra.mxu0 0.0
        %1038 = vmatpush.msra.mxu0 0.0
        %1039 = vmatpush.msra.mxu0 0.0
        %1040 = vmatpush.msra.mxu0 0.0
        %1041 = vmatpush.msra.mxu0 0.0
        %1042 = vmatpush.msra.mxu0 0.0
        %1043 = vmatpush.msra.mxu0 0.0
        %1044 = vmatpush.msra.mxu0 0.0
        %1045 = vmatpush.msra.mxu0 0.0
        %1046 = vmatpush.msra.mxu0 0.0
        %1047 = vmatpush.msra.mxu0 0.0
        %1048 = vmatpush.msra.mxu0 0.0
        %1049 = vmatpush.msra.mxu0 0.0
        %1050 = vmatpush.msra.mxu0 0.0
        %1051 = vmatpush.msra.mxu0 0.0
        %1052 = vmatpush.msra.mxu0 %v964
        %1053 = vmatmul.f32.gmra.mxu0 %v1035
        %v1054 = vpop.f32.mrf.mxu0
        %v1055 = vadd.f32 0.0, %v1054
        %1056 = vdwg.mxu0
        %v1057 = vrot.slane %v1032, 4
        %vm1058 = vcmask 1047556
        %v1059 = vsel %vm1058, %v1057, %v986
        %v1060 = vrot.slane %v986, 4
        %v1061 = vsel %vm1058, %v1032, %v1060
        %v1063 = vunpack.c.l.s4 1983009808
        %v1064 = vunpack.c.0.s8 %v1063
        %v1065 = vperm.slane %v1059, %v1064
        %v1067 = vunpack.c.l.s4 1983009808
        %v1068 = vunpack.c.0.s8 %v1067
        %v1069 = vperm.slane %v1061, %v1068
        %v1070 = vrot.slane %v1055, 4
        %v1071 = vsel %vm1058, %v1070, %v1009
        %v1072 = vrot.slane %v1009, 4
        %v1073 = vsel %vm1058, %v1055, %v1072
        %v1075 = vunpack.c.l.s4 1983009808
        %v1076 = vunpack.c.0.s8 %v1075
        %v1077 = vperm.slane %v1071, %v1076
        %v1079 = vunpack.c.l.s4 1983009808
        %v1080 = vunpack.c.0.s8 %v1079
        %v1081 = vperm.slane %v1073, %v1080
        %v1082 = vrot.slane %v1077, 4
        %v1083 = vsel %vm1058, %v1082, %v1065
        %v1084 = vrot.slane %v1065, 4
        %v1085 = vsel %vm1058, %v1077, %v1084
        %v1087 = vunpack.c.l.s4 1934713408
        %v1088 = vunpack.c.0.s8 %v1087
        %v1089 = vperm.slane %v1083, %v1088
        %v1091 = vunpack.c.l.s4 1934713408
        %v1092 = vunpack.c.0.s8 %v1091
        %v1093 = vperm.slane %v1085, %v1092
        %v1094 = vrot.slane %v1081, 4
        %v1095 = vsel %vm1058, %v1094, %v1069
        %v1096 = vrot.slane %v1069, 4
        %v1097 = vsel %vm1058, %v1081, %v1096
        %v1099 = vunpack.c.l.s4 1934713408
        %v1100 = vunpack.c.0.s8 %v1099
        %v1101 = vperm.slane %v1095, %v1100
        %v1103 = vunpack.c.l.s4 1934713408
        %v1104 = vunpack.c.0.s8 %v1103
        %v1105 = vperm.slane %v1097, %v1104
        %v1106 = vrot.slane %v1089, 4
        %v1107 = vsel %vm1058, 0.0, %v1106
        %v1108 = vrot.slane %v1093, 4
        %v1109 = vsel %vm1058, 0.0, %v1108
        %v1110 = vrot.slane %v1101, 4
        %v1111 = vsel %vm1058, 0.0, %v1110
        %v1112 = vrot.slane %v1105, 4
        %v1113 = vsel %vm1058, 0.0, %v1112
        %v1114 = vsel %vm1058, %v1108, %v1089
        %v1116 = vunpack.c.l.s4 1983009808
        %v1117 = vunpack.c.0.s8 %v1116
        %v1118 = vperm.slane %v1114, %v1117
        %v1119 = vrot.slane %v1109, 4
        %v1120 = vsel %vm1058, %v1119, %v1107
        %v1122 = vunpack.c.l.s4 1983009808
        %v1123 = vunpack.c.0.s8 %v1122
        %v1124 = vperm.slane %v1120, %v1123
        %v1125 = vsel %vm1058, %v1112, %v1101
        %v1127 = vunpack.c.l.s4 1983009808
        %v1128 = vunpack.c.0.s8 %v1127
        %v1129 = vperm.slane %v1125, %v1128
        %v1130 = vrot.slane %v1113, 4
        %v1131 = vsel %vm1058, %v1130, %v1111
        %v1133 = vunpack.c.l.s4 1983009808
        %v1134 = vunpack.c.0.s8 %v1133
        %v1135 = vperm.slane %v1131, %v1134
        %v1136 = vrot.slane %v1124, 4
        %v1137 = vsel %vm1058, %v1136, %v1118
        %v1138 = vrot.slane %v1118, 4
        %v1139 = vsel %vm1058, %v1124, %v1138
        %v1141 = vunpack.c.l.s4 1934713408
        %v1142 = vunpack.c.0.s8 %v1141
        %v1143 = vperm.slane %v1137, %v1142
        %v1145 = vunpack.c.l.s4 1934713408
        %v1146 = vunpack.c.0.s8 %v1145
        %v1147 = vperm.slane %v1139, %v1146
        %v1148 = vrot.slane %v1135, 4
        %v1149 = vsel %vm1058, %v1148, %v1129
        %v1150 = vrot.slane %v1129, 4
        %v1151 = vsel %vm1058, %v1135, %v1150
        %v1153 = vunpack.c.l.s4 1934713408
        %v1154 = vunpack.c.0.s8 %v1153
        %v1155 = vperm.slane %v1149, %v1154
        %v1157 = vunpack.c.l.s4 1934713408
        %v1158 = vunpack.c.0.s8 %v1157
        %v1159 = vperm.slane %v1151, %v1158
        %v1160 = vrot.slane %v1155, 4
        %v1161 = vsel %vm1058, %v1160, %v1143
        %v1162 = vrot.slane %v1143, 4
        %v1163 = vsel %vm1058, %v1155, %v1162
        %v1164 = vrot.slane %v1159, 4
        %v1165 = vsel %vm1058, %v1164, %v1147
        %v1166 = vrot.slane %v1147, 4
        %v1167 = vsel %vm1058, %v1159, %v1166
        %1169 = vrot.lane.b32.xlu0 %v1163, 8
        %v1170 = vpop.permute.xlu0 %1169
        %1173 = vrot.lane.b32.xlu0 %v1165, 16
        %v1174 = vpop.permute.xlu0 %1173
        %1177 = vrot.lane.b32.xlu0 %v1167, 24
        %v1178 = vpop.permute.xlu0 %1177
        %v1180 = vsel %vm808, %v1161, %v1170
        %vm1181 = vcmask 130048
        %v1182 = vsel %vm1181, %v1180, %v1174
        %vm1183 = vcmask 195584
        %v1184 = vsel %vm1183, %v1182, %v1178
        %v1185 = vld [vmem:[#allocation10] sm:$0xff]
        %v1186 = vld [vmem:[#allocation10 + $0x8] sm:$0xff]
        %v1187 = vld [vmem:[#allocation10 + $0x10] sm:$0xff]
        %v1188 = vld [vmem:[#allocation10 + $0x18] sm:$0xff]
        %v1189 = vld [vmem:[%s4] sm:$0x1]
        %v1191 = vperm.slane %v1189, 0
        %vm1193 = vcmask 261120
        %v1195 = vsel %vm1193, %v1184, 0
        %1197 = vmatpush.msra.mxu0 0.0
        %1198 = vmatpush.msra.mxu0 0.0
        %1199 = vmatpush.msra.mxu0 0.0
        %1200 = vmatpush.msra.mxu0 0.0
        %1201 = vmatpush.msra.mxu0 0.0
        %1202 = vmatpush.msra.mxu0 0.0
        %1203 = vmatpush.msra.mxu0 0.0
        %1204 = vmatpush.msra.mxu0 0.0
        %1205 = vmatpush.msra.mxu0 0.0
        %1206 = vmatpush.msra.mxu0 0.0
        %1207 = vmatpush.msra.mxu0 0.0
        %1208 = vmatpush.msra.mxu0 0.0
        %1209 = vmatpush.msra.mxu0 %v1188
        %1210 = vmatpush.msra.mxu0 %v1187
        %1211 = vmatpush.msra.mxu0 %v1186
        %1212 = vmatpush.msra.mxu0 %v1185
        %1213 = vmatmul.f32.gmra.mxu0 %v1195
        %v1214 = vpop.f32.mrf.mxu0
        %v1215 = vadd.f32 %v1191, %v1214
        %1216 = vdwg.mxu0
        %s1217 = scalar_lea.vmem %s334, %s798 [#allocation5]
        %v1218 = vld [vmem:[%s1217] sm:$0xff]
        %v1219 = vadd.f32 %v1215, %v1218
        %v1220 = vsel %vm1193, %v1219, 0.0
        %1221 = vadd.xlane.f32.xlu0 %v1220
        %v1222 = vpop.xlane.xlu0 %1221
        %v1223 = vrcp.pop 32.0
        %v1224 = vmul.f32 32.0, %v1223
        %v1225 = vsub.f32 1.0, %v1224
        %v1226 = vmul.f32 %v1223, %v1225
        %v1227 = vadd.f32 %v1223, %v1226
        %vm1228 = vweird.f32 %v1223
        %v1229 = vsel %vm1228, %v1223, %v1227
        %v1230 = vmul.f32 %v1222, %v1229
        %v1231 = vsub.f32 %v1219, %v1230
        %v1232 = vmul.f32 %v1231, %v1231
        %v1233 = vsel %vm1193, %v1232, 0.0
        %1234 = vadd.xlane.f32.xlu0 %v1233
        %v1235 = vpop.xlane.xlu0 %1234
        %v1236 = vmul.f32 %v1235, %v1229
        %v1237 = vadd.f32 %v1236, 1e-05
        %v1238 = vrsqrt.pop %v1237
        %v1239 = vmul.f32 %v1238, %v1237
        %v1240 = vmul.f32 %v1239, %v1238
        %v1241 = vmul.f32 0.5, %v1240
        %v1242 = vsub.f32 1.5, %v1241
        %v1243 = vmul.f32 %v1238, %v1242
        %vm1244 = vweird.f32 %v1237
        %vm1245 = vweird.f32 %v1238
        %vm1246 = vmor %vm1244, %vm1245
        %v1247 = vsel %vm1246, %v1238, %v1243
        %v1248 = vmul.f32 %v1231, %v1247
        %v1249 = vld [vmem:[%s5] sm:$0x1]
        %v1251 = vperm.slane %v1249, 0
        %v1253 = vmul.f32 %v1248, %v1251
        %v1254 = vld [vmem:[%s6] sm:$0x1]
        %v1256 = vperm.slane %v1254, 0
        %v1258 = vadd.f32 %v1253, %v1256
        %1259 = vst.msk [vmem:[%s375] sm:$0xff] %vm1193, %v1258
        %s1260 = sand.u32 %s204, 1
        %s1261 = scalar_lea.sflag [#allocation7], %s1260
        %s1262 = sand.u32 %s204, 1
        %s1263 = smul.addr %s1262, 8
        %s1264 = scalar_lea.vmem [#allocation11], %s1263
        %s1265 = sand.u32 %s232, 1
        %s1266 = scalar_lea.sflag [#allocation13], %s1265
        %s1267 = sand.u32 %s232, 1
        %s1268 = smul.addr %s1267, 32
        %s1269 = scalar_lea.vmem [#allocation12], %s1268
        // Predicated region
        $region65: #{tpu_custom_call.1} parent=47 // pred_check
          %p1270 = pneg %p214
        $region66: #{tpu_custom_call.1} parent=47 // pred_check_branch
          %1272 = sbr.rel (%p1270) target = $region68
        $region67: #{tpu_custom_call.1} parent=47 // pred_region
          %1274 = vsyncadd %s1261, 0
          %s1275 = sadd.s32 %s35, %s34
          %s1276 = smul.addr %s1275, 8
          %s1277 = scalar_lea.hbm %s7, %s1276
          %s1279 = sshll.u32 %s1264, 4
          %s1280 = int_to_ptr.vmem [resolvable:$true] %s1279
          %s1281 = sshll.u32 %s1277, 4
          %s1282 = int_to_ptr.hbm [resolvable:$true] %s1281
          %1284 = dma.vmem_to_hbm [thread:$0]  %s1280, 128, %s1282, %s1261
        $region68: #{tpu_custom_call.1} parent=47 // pred_fallthru
          _
        // Predicated region
        $region69: #{tpu_custom_call.1} parent=47 // pred_check
          %p1285 = pneg %p242
        $region70: #{tpu_custom_call.1} parent=47 // pred_check_branch
          %1287 = sbr.rel (%p1285) target = $region72
        $region71: #{tpu_custom_call.1} parent=47 // pred_region
          %1289 = vsyncadd %s1266, 0
          %s1290 = smul.addr %s34, 4
          %s1291 = sadd.s32 %s35, %s1290
          %s1292 = smul.addr %s1291, 8
          %s1293 = scalar_lea.hbm %s8, %s1292
          %s1294 = sshll.u32 %s1269, 4
          %s1295 = int_to_ptr.vmem [resolvable:$true] %s1294
          %s1296 = sshll.u32 %s1293, 4
          %s1297 = int_to_ptr.hbm [resolvable:$true] %s1296
          %1302 = dma.vmem_to_hbm [thread:$0]  %s1295, 512, %s1297, %s1266, 128, 128, 8
        $region72: #{tpu_custom_call.1} parent=47 // pred_fallthru
          _
      $region48: #{tpu_custom_call.1} parent=5 // pred_fallthru
        _
      %p1303 = scmp.le.s32.totalorder 2, %s25
      // Predicated region
      $region73: #{tpu_custom_call.1} parent=5 // pred_check
        %p1304 = pneg %p1303
      $region74: #{tpu_custom_call.1} parent=5 // pred_check_branch
        %1306 = sbr.rel (%p1304) target = $region76
      $region75: #{tpu_custom_call.1} parent=5 // pred_region
        %s1307 = ssub.s32 %s25, 2
        // Predicated region
        $region77: #{tpu_custom_call.1} parent=75 // pred_check
          %p1308 = pneg %p220
        $region78: #{tpu_custom_call.1} parent=75 // pred_check_branch
          %1310 = sbr.rel (%p1308) target = $region80
        $region79: #{tpu_custom_call.1} parent=75 // pred_region
          %s1311 = sand.u32 %s205, 1
          %s1312 = scalar_lea.sflag [#allocation7], %s1311
          %s1313 = sand.u32 %s205, 1
          %s1314 = smul.addr %s1313, 8
          %s1315 = scalar_lea.vmem [#allocation11], %s1314
          %1317 = dma.done %s1312, 128
        $region80: #{tpu_custom_call.1} parent=75 // pred_fallthru
          _
        // Predicated region
        $region81: #{tpu_custom_call.1} parent=75 // pred_check
          %p1318 = pneg %p248
        $region82: #{tpu_custom_call.1} parent=75 // pred_check_branch
          %1320 = sbr.rel (%p1318) target = $region84
        $region83: #{tpu_custom_call.1} parent=75 // pred_region
          %s1321 = sand.u32 %s233, 1
          %s1322 = scalar_lea.sflag [#allocation13], %s1321
          %s1323 = sand.u32 %s233, 1
          %s1324 = smul.addr %s1323, 32
          %s1325 = scalar_lea.vmem [#allocation12], %s1324
          %1327 = dma.done %s1322, 512
        $region84: #{tpu_custom_call.1} parent=75 // pred_fallthru
          _
      $region76: #{tpu_custom_call.1} parent=5 // pred_fallthru
        _
    $region6: #{tpu_custom_call.1} parent=1 // loop_footer
      %s29 = sadd.s32 1, %s25
    $region7: #{tpu_custom_call.1} parent=1 // loop_footer_branch
      %24 = sbr.rel target = $region3
    $region8: #{tpu_custom_call.1} parent=1 // loop_exit
      _
    %1328 = vsyncpa [#allocation6], 1
    %s1329 = scalar_lea.sflag [#allocation6], 1
    %1330 = vsyncpa %s1329, 1
    %1331 = vsyncpa [#allocation9], 1
    %1332 = vsyncpa [#allocation7], 1
    %s1333 = scalar_lea.sflag [#allocation7], 1
    %1334 = vsyncpa %s1333, 1
    %1335 = vsyncpa [#allocation13], 1
    %s1336 = scalar_lea.sflag [#allocation13], 1
    %1337 = vsyncpa %s1336, 1

</llo_original>
